<compile_context>
chip_gen: v6e
topology: v6e:2x2x1
jax: 0.10.0
libtpu: 0.0.40
codegen_flags: <defaults>
</compile_context>

<pallas_src>
import functools
import math

import jax
import jax.numpy as jnp
from jax import lax
from jax.experimental import pallas as pl
from jax.experimental.pallas import tpu as pltpu


def _layer_norm(v, gamma, beta, eps=1e-6):
    mu = jnp.mean(v, axis=-1, keepdims=True)
    var = jnp.mean((v - mu) ** 2, axis=-1, keepdims=True)
    return (v - mu) * lax.rsqrt(var + eps) * gamma + beta


def _choose_q_tile(L, return_attn):
    # Larger tiles amortize per-grid-step overhead (128 MiB VMEM parts benefit
    # from 256 when the (H,tq,L) attn block is not written back).
    cands = (128, 64, 32, 16, 8) if return_attn else (256, 128, 64, 32, 16, 8)
    for t in cands:
        if L % t == 0:
            return t
    return L


@functools.lru_cache(maxsize=None)
def _single_buffer_supported():
    """One-time probe: does this jax build accept pipeline_mode=pl.Buffered(1)?"""
    try:
        def k(x_ref, w_ref, o_ref):
            o_ref[...] = x_ref[...] + w_ref[0]

        f = pl.pallas_call(
            k,
            grid=(2,),
            in_specs=[pl.BlockSpec((8, 128), lambda i: (i, 0)),
                      pl.BlockSpec((1, 128), lambda i: (0, 0),
                                   pipeline_mode=pl.Buffered(1))],
            out_specs=pl.BlockSpec((8, 128), lambda i: (i, 0)),
            out_shape=jax.ShapeDtypeStruct((16, 128), jnp.float32))
        jax.block_until_ready(f(jnp.zeros((16, 128), jnp.float32),
                                jnp.zeros((1, 128), jnp.float32)))
        return True
    except Exception:  # capability probe only — a trivial kernel
        return False


def _default_vmem_limit_bytes():
    try:
        cap = int(pltpu.get_tpu_info().vmem_capacity_bytes)
    except Exception:
        cap = 64 * 1024 * 1024          # conservative (v7x physical)
    return max(32 * 1024 * 1024, cap - 4 * 1024 * 1024)


def _make_kernel(n_head, d_k, d_v, tq, mask_kind, return_attn, compute_dtype,
                 kv_per_step):
    """mask_kind: None | 'row' ((1,L) key-padding) | 'full' ((tq,L) block)."""

    def kernel(*refs):
        i = 0
        x_ref = refs[i]; i += 1                       # (L, D)  full sequence, f32
        mask_ref = None
        if mask_kind is not None:
            mask_ref = refs[i]; i += 1                # (1, L) or (tq, L)
        (wq_ref, wk_ref, wv_ref, fc_ref,
         ln1g_ref, ln1b_ref, w1_ref, b1_ref, w2_ref, b2_ref,
         ln2g_ref, ln2b_ref) = refs[i:i + 12]
        i += 12
        out_ref = refs[i]; i += 1                     # (tq, D)
        attn_ref = None
        if return_attn:
            attn_ref = refs[i]; i += 1                # (H, tq, L)
        k_scr, v_scr, q_scr, ov_scr = refs[i:i + 4]

        qi = pl.program_id(1)

        def _dot(a, b):
            # b (weights / scratch) is already compute_dtype; accumulate in f32.
            return jnp.dot(a.astype(compute_dtype), b,
                           preferred_element_type=jnp.float32)

        def _project_kv():
            xf = x_ref[...]                                        # (L, D)
            k_scr[...] = _dot(xf, wk_ref[...]).astype(k_scr.dtype)
            v_scr[...] = _dot(xf, wv_ref[...]).astype(v_scr.dtype)

        if kv_per_step:
            _project_kv()                 # q axis is parallel -> no carried state
        else:
            @pl.when(qi == 0)
            def _():
                _project_kv()
        # TODO(synk): for L >= ~2-4k replace the resident full-L K/V scratch with
        # an inner KV-tile loop + online softmax (flash-style) and move the K/V
        # projection off the qi==0 step to remove the per-batch pipeline bubble.

        # --- query tile of the input (also the residual), stays f32 ---
        q_start = qi * tq
        if tq % 8 == 0:
            q_start = pl.multiple_of(q_start, tq)
        xq = x_ref[pl.ds(q_start, tq), :]                          # (tq, D) f32

        # Q projection (1/sqrt(d_k) already folded into wq on the host); staged
        # into VMEM scratch so per-head slices are Ref slices (no value relayout).
        q_scr[...] = _dot(xq, wq_ref[...]).astype(q_scr.dtype)

        if mask_kind is not None:
            # additive -1e9 bias computed ONCE per q-tile, shared by all heads
            mask_bias = jnp.where(mask_ref[...] == 0.0,
                                  jnp.float32(-1e9), jnp.float32(0.0))

        # --- per-head attention; head outputs staged into a lane-dense scratch ---
        for h in range(n_head):
            qh = q_scr[:, h * d_k:(h + 1) * d_k]                   # (tq, dk)
            kh = k_scr[:, h * d_k:(h + 1) * d_k]                   # (L, dk)
            vh = v_scr[:, h * d_v:(h + 1) * d_v]                   # (L, dv)

            scores = lax.dot_general(                              # (tq, L) f32
                qh, kh, (((1,), (1,)), ((), ())),
                preferred_element_type=jnp.float32)
            if mask_kind is not None:
                scores = scores + mask_bias

            m = jnp.max(scores, axis=-1, keepdims=True)
            e = jnp.exp(scores - m)
            denom = jnp.sum(e, axis=-1, keepdims=True)

            if return_attn:
                p = e * (1.0 / denom)            # (tq,1) divide + (tq,L) multiply
                attn_ref[h] = p.astype(attn_ref.dtype)
                ov = _dot(p, vh)                                   # (tq, dv)
            else:
                # defer normalization; approx reciprocal runs on the EUP slot
                ov = _dot(e, vh) * pl.reciprocal(denom, approx=True)

            ov_scr[:, h * d_v:(h + 1) * d_v] = ov.astype(ov_scr.dtype)

        # --- single fused output projection: (tq, H*dv) @ (H*dv, D) ---
        proj = _dot(ov_scr[...], fc_ref[...])                      # (tq, D) f32

        # --- residual + LayerNorm (attention block) ---
        r1 = proj + xq
        ln1 = _layer_norm(r1, ln1g_ref[0], ln1b_ref[0])

        # --- position-wise feed-forward ---
        h1 = jnp.maximum(_dot(ln1, w1_ref[...]) + b1_ref[0], 0.0)  # ReLU
        h2 = _dot(h1, w2_ref[...]) + b2_ref[0]

        # --- residual + LayerNorm (FFN block) ---
        out_ref[...] = _layer_norm(h2 + ln1, ln2g_ref[0],
                                   ln2b_ref[0]).astype(out_ref.dtype)

    return kernel


def encoder_layer(x, params, n_head, mask=None, *, return_attn=True,
                  compute_dtype=jnp.float32, q_tile=None):
    """x: (bs, L, d_model) f32; params pre-transposed so the kernel computes x @ W.
    mask: optional (bs, L) key-padding row or (bs, L, L); nonzero=keep, 0=masked."""
    bs, L, D = x.shape
    Hdk = params["wq"].shape[1]
    Hdv = params["wv"].shape[1]
    d_k = Hdk // n_head
    d_v = Hdv // n_head
    d_ff = params["w1"].shape[1]

    tq = q_tile if q_tile is not None else _choose_q_tile(L, return_attn)
    if L % tq != 0:
        raise ValueError(f"q_tile={tq} must divide seq_len={L}")
    nq = L // tq

    # --- mask plumbing: slim (bs,1,L) row for key padding, or full (bs,L,L) ---
    mask_kind, mask_arr = None, None
    if mask is not None:
        if mask.ndim == 2:
            mask_kind = "row"
            mask_arr = mask.astype(jnp.float32).reshape(bs, 1, L)
        elif mask.ndim == 3:
            mask_kind = "full"
            mask_arr = mask.astype(jnp.float32)
        else:
            raise ValueError("mask must have shape (bs, L) or (bs, L, L)")

    # v7x megacore: if batch alone cannot feed two TensorCores, make the q-tile
    # axis the parallel axis and recompute K/V each step (no scratch carry).
    q_parallel = (bs == 1 and nq > 1)
    kv_per_step = q_parallel

    attn_dtype = jnp.float32 if compute_dtype == jnp.float32 else jnp.bfloat16

    kernel = _make_kernel(n_head, d_k, d_v, tq, mask_kind, return_attn,
                          compute_dtype, kv_per_step)

    # host-side weight prep: fold 1/sqrt(d_k) into wq; cast once to compute_dtype
    inv_temp = 1.0 / math.sqrt(d_k)
    cast = lambda w: w.astype(compute_dtype)
    wq = cast(params["wq"] * inv_temp)
    wk = cast(params["wk"])
    wv = cast(params["wv"])
    fc = cast(params["fc"])
    w1 = cast(params["w1"])
    w2 = cast(params["w2"])

    single_buffer = _single_buffer_supported()

    def wspec(shape):
        # constant blocks across the grid — single-buffer them when supported
        if single_buffer:
            return pl.BlockSpec(shape, lambda b, qi: (0, 0),
                                pipeline_mode=pl.Buffered(1))
        return pl.BlockSpec(shape, lambda b, qi: (0, 0))

    in_specs = [pl.BlockSpec((None, L, D), lambda b, qi: (b, 0, 0))]      # x
    if mask_kind == "row":
        in_specs.append(pl.BlockSpec((None, 1, L), lambda b, qi: (b, 0, 0)))
    elif mask_kind == "full":
        in_specs.append(pl.BlockSpec((None, tq, L), lambda b, qi: (b, qi, 0)))
    in_specs += [
        wspec((D, Hdk)),       # wq (pre-scaled)
        wspec((D, Hdk)),       # wk
        wspec((D, Hdv)),       # wv
        wspec((Hdv, D)),       # fc
        wspec((1, D)),         # ln1 gamma
        wspec((1, D)),         # ln1 beta
        wspec((D, d_ff)),      # w1
        wspec((1, d_ff)),      # b1
        wspec((d_ff, D)),      # w2
        wspec((1, D)),         # b2
        wspec((1, D)),         # ln2 gamma
        wspec((1, D)),         # ln2 beta
    ]

    out_specs = [pl.BlockSpec((None, tq, D), lambda b, qi: (b, qi, 0))]
    out_shape = [jax.ShapeDtypeStruct((bs, L, D), jnp.float32)]
    if return_attn:
        out_specs.append(
            pl.BlockSpec((None, n_head, tq, L), lambda b, qi: (b, 0, qi, 0)))
        out_shape.append(jax.ShapeDtypeStruct((bs, n_head, L, L), attn_dtype))

    grid_spec = pltpu.PrefetchScalarGridSpec(
        num_scalar_prefetch=0,
        grid=(bs, nq),
        in_specs=in_specs,
        out_specs=out_specs,
        scratch_shapes=[
            pltpu.VMEM((L, Hdk), compute_dtype),     # K (all heads)
            pltpu.VMEM((L, Hdv), compute_dtype),     # V (all heads)
            pltpu.VMEM((tq, Hdk), compute_dtype),    # staged Q
            pltpu.VMEM((tq, Hdv), compute_dtype),    # staged per-head outputs
        ])

    dims = ("parallel", "parallel" if q_parallel else "arbitrary")

    call = pl.pallas_call(
        kernel,
        grid_spec=grid_spec,
        out_shape=tuple(out_shape),
        compiler_params=pltpu.CompilerParams(
            dimension_semantics=dims,
            vmem_limit_bytes=_default_vmem_limit_bytes()))

    args = [x.astype(jnp.float32)]
    if mask_kind is not None:
        args.append(mask_arr)
    args += [wq, wk, wv, fc,
             params["ln1_g"], params["ln1_b"],
             w1, params["b1"], w2, params["b2"],
             params["ln2_g"], params["ln2_b"]]

    res = jax.block_until_ready(call(*args))

    if return_attn:
        return res[0], res[1]
    out = res[0] if isinstance(res, (tuple, list)) else res
    return out, None


def make_params(key, d_model, n_head, d_k, d_v, d_ff):
    ks = jax.random.split(key, 8)
    scale = 0.05
    return {
        # stored pre-transposed: kernel computes x @ W
        "wq": scale * jax.random.normal(ks[0], (d_model, n_head * d_k), jnp.float32),
        "wk": scale * jax.random.normal(ks[1], (d_model, n_head * d_k), jnp.float32),
        "wv": scale * jax.random.normal(ks[2], (d_model, n_head * d_v), jnp.float32),
        "fc": scale * jax.random.normal(ks[3], (n_head * d_v, d_model), jnp.float32),
        "w1": scale * jax.random.normal(ks[4], (d_model, d_ff), jnp.float32),
        "b1": scale * jax.random.normal(ks[5], (1, d_ff), jnp.float32),
        "w2": scale * jax.random.normal(ks[6], (d_ff, d_model), jnp.float32),
        "b2": scale * jax.random.normal(ks[7], (1, d_model), jnp.float32),
        "ln1_g": jnp.ones((1, d_model), jnp.float32),
        "ln1_b": jnp.zeros((1, d_model), jnp.float32),
        "ln2_g": jnp.ones((1, d_model), jnp.float32),
        "ln2_b": jnp.zeros((1, d_model), jnp.float32),
    }


def reference(x, p, n_head, mask=None):
    """Pure-JAX reference of EncoderLayer.forward (eval mode)."""
    bs, L, D = x.shape
    dk = p["wq"].shape[1] // n_head
    dv = p["wv"].shape[1] // n_head
    q = (x @ p["wq"]).reshape(bs, L, n_head, dk).transpose(0, 2, 1, 3)
    k = (x @ p["wk"]).reshape(bs, L, n_head, dk).transpose(0, 2, 1, 3)
    v = (x @ p["wv"]).reshape(bs, L, n_head, dv).transpose(0, 2, 1, 3)
    scores = jnp.einsum("bhqd,bhkd->bhqk", q / math.sqrt(dk), k)
    if mask is not None:
        scores = jnp.where(mask[:, None, :, :] == 0, -1e9, scores)
    attn = jax.nn.softmax(scores, axis=-1)
    o = jnp.einsum("bhqk,bhkd->bhqd", attn, v)
    o = o.transpose(0, 2, 1, 3).reshape(bs, L, n_head * dv)
    o = o @ p["fc"] + x
    o = _layer_norm(o, p["ln1_g"][0], p["ln1_b"][0])
    f = jnp.maximum(o @ p["w1"] + p["b1"][0], 0.0) @ p["w2"] + p["b2"][0]
    f = f + o
    f = _layer_norm(f, p["ln2_g"][0], p["ln2_b"][0])
    return f, attn


if __name__ == "__main__":
    # small shapes consistent with the module's forward
    bs, L = 2, 8
    n_head, d_k, d_v, d_model, d_ff = 4, 8, 8, 32, 64

    key = jax.random.PRNGKey(0)
    kx, kp = jax.random.split(key)
    x = jax.random.normal(kx, (bs, L, d_model), jnp.float32)
    params = make_params(kp, d_model, n_head, d_k, d_v, d_ff)

    ref_out, ref_attn = reference(x, params, n_head)

    # 1) default path (mask=None), returns attention probabilities (f32 exact)
    out, attn = encoder_layer(x, params, n_head)
    assert jnp.allclose(out, ref_out, atol=1e-4, rtol=1e-4), "output mismatch"
    assert jnp.allclose(attn, ref_attn, atol=1e-5, rtol=1e-5), "attn mismatch"

    # 2a) slf_attn_mask path, slim (bs, L) key-padding mask
    lengths = jnp.array([L, L - 2], dtype=jnp.int32)
    key_keep = (jnp.arange(L)[None, :] < lengths[:, None])               # (bs, L)
    full_mask = jnp.broadcast_to(key_keep[:, None, :], (bs, L, L)).astype(jnp.float32)
    ref_out_m, ref_attn_m = reference(x, params, n_head, mask=full_mask)

    out_m, attn_m = encoder_layer(x, params, n_head,
                                  mask=key_keep.astype(jnp.float32))
    assert jnp.allclose(out_m, ref_out_m, atol=1e-4, rtol=1e-4), "row-mask output mismatch"
    assert jnp.allclose(attn_m, ref_attn_m, atol=1e-5, rtol=1e-5), "row-mask attn mismatch"

    # 2b) full (bs, L, L) mask path (same semantics as the original module)
    out_f, attn_f = encoder_layer(x, params, n_head, mask=full_mask)
    assert jnp.allclose(out_f, ref_out_m, atol=1e-4, rtol=1e-4), "full-mask output mismatch"
    assert jnp.allclose(attn_f, ref_attn_m, atol=1e-5, rtol=1e-5), "full-mask attn mismatch"

    # 3) production-ish path: no (bs,H,L,L) attn writeback, approx-recip softmax
    out_fast, _ = encoder_layer(x, params, n_head, return_attn=False)
    assert jnp.allclose(out_fast, ref_out, atol=1e-2, rtol=1e-2), "fast-path output mismatch"

    # 4) production bf16 MXU path: weights cast on the host, f32 accumulation
    out_bf16, _ = encoder_layer(x, params, n_head, return_attn=False,
                                compute_dtype=jnp.bfloat16)
    assert jnp.allclose(out_bf16, ref_out, atol=1e-1, rtol=1e-1), "bf16-path output mismatch"

    print("KERNEL_OK")
</pallas_src>

<mosaic_0001>
module attributes {stable_mosaic.version = 11 : i64} {
  func.func @k(%arg0: i32, %arg1: memref<8x128xf32, #tpu.memory_space<vmem>>, %arg2: memref<1x128xf32, #tpu.memory_space<vmem>>, %arg3: memref<8x128xf32, #tpu.memory_space<vmem>>) attributes {dimension_semantics = [#tpu.dimension_semantics<arbitrary>], iteration_bounds = array<i64: 2>, scalar_prefetch = 0 : i64, scratch_operands = 0 : i64, tpu.core_type = #tpu.core_type<tc>, window_params = [{transform_indices = @transform_0, window_bounds = array<i64: 8, 128>}, {pipeline_mode = #tpu.pipeline_mode<synchronous>, transform_indices = @transform_1, window_bounds = array<i64: 1, 128>}, {transform_indices = @transform_2, window_bounds = array<i64: 8, 128>}]} {
    %c0 = arith.constant 0 : index
    %c0_0 = arith.constant 0 : index
    %0 = vector.load %arg1[%c0, %c0_0] : memref<8x128xf32, #tpu.memory_space<vmem>>, vector<8x128xf32>
    %c0_1 = arith.constant 0 : index
    %c0_2 = arith.constant 0 : index
    %1 = vector.load %arg2[%c0_1, %c0_2] : memref<1x128xf32, #tpu.memory_space<vmem>>, vector<1x128xf32>
    %2 = vector.shape_cast %1 : vector<1x128xf32> to vector<128xf32>
    %3 = vector.shape_cast %2 : vector<128xf32> to vector<1x128xf32>
    %4 = vector.broadcast %3 : vector<1x128xf32> to vector<8x128xf32>
    %5 = arith.addf %0, %4 : vector<8x128xf32>
    %c0_3 = arith.constant 0 : index
    %c0_4 = arith.constant 0 : index
    %6 = vector.load %arg3[%c0_3, %c0_4] : memref<8x128xf32, #tpu.memory_space<vmem>>, vector<8x128xf32>
    tpu.vector_store %arg3[%c0_3, %c0_4], %5 {strides = array<i32>} : memref<8x128xf32, #tpu.memory_space<vmem>>, vector<8x128xf32>,
    return
  }
  func.func @transform_0(%arg0: i32) -> (i32, i32) {
    %c0_i32 = arith.constant 0 : i32
    %c0_i32_0 = arith.constant 0 : i32
    return %arg0, %c0_i32 : i32, i32
  }
  func.func @transform_1(%arg0: i32) -> (i32, i32) {
    %c0_i32 = arith.constant 0 : i32
    %c0_i32_0 = arith.constant 0 : i32
    %c0_i32_1 = arith.constant 0 : i32
    return %c0_i32, %c0_i32_0 : i32, i32
  }
  func.func @transform_2(%arg0: i32) -> (i32, i32) {
    %c0_i32 = arith.constant 0 : i32
    %c0_i32_0 = arith.constant 0 : i32
    return %arg0, %c0_i32 : i32, i32
  }
}

module attributes {stable_mosaic.version = 11 : i64} {
  func.func @kernel(%arg0: i32, %arg1: i32, %arg2: memref<1x8x32xf32, #tpu.memory_space<vmem>>, %arg3: memref<32x32xf32, #tpu.memory_space<vmem>>, %arg4: memref<32x32xf32, #tpu.memory_space<vmem>>, %arg5: memref<32x32xf32, #tpu.memory_space<vmem>>, %arg6: memref<32x32xf32, #tpu.memory_space<vmem>>, %arg7: memref<1x32xf32, #tpu.memory_space<vmem>>, %arg8: memref<1x32xf32, #tpu.memory_space<vmem>>, %arg9: memref<32x64xf32, #tpu.memory_space<vmem>>, %arg10: memref<1x64xf32, #tpu.memory_space<vmem>>, %arg11: memref<64x32xf32, #tpu.memory_space<vmem>>, %arg12: memref<1x32xf32, #tpu.memory_space<vmem>>, %arg13: memref<1x32xf32, #tpu.memory_space<vmem>>, %arg14: memref<1x32xf32, #tpu.memory_space<vmem>>, %arg15: memref<1x8x32xf32, #tpu.memory_space<vmem>>, %arg16: memref<1x4x8x8xf32, #tpu.memory_space<vmem>>, %arg17: memref<8x32xf32, #tpu.memory_space<vmem>>, %arg18: memref<8x32xf32, #tpu.memory_space<vmem>>, %arg19: memref<8x32xf32, #tpu.memory_space<vmem>>, %arg20: memref<8x32xf32, #tpu.memory_space<vmem>>) attributes {dimension_semantics = [#tpu.dimension_semantics<parallel>, #tpu.dimension_semantics<arbitrary>], iteration_bounds = array<i64: 2, 1>, scalar_prefetch = 0 : i64, scratch_operands = 4 : i64, tpu.core_type = #tpu.core_type<tc>, window_params = [{transform_indices = @transform_0, window_bounds = array<i64: 1, 8, 32>}, {pipeline_mode = #tpu.pipeline_mode<synchronous>, transform_indices = @transform_1, window_bounds = array<i64: 32, 32>}, {pipeline_mode = #tpu.pipeline_mode<synchronous>, transform_indices = @transform_2, window_bounds = array<i64: 32, 32>}, {pipeline_mode = #tpu.pipeline_mode<synchronous>, transform_indices = @transform_3, window_bounds = array<i64: 32, 32>}, {pipeline_mode = #tpu.pipeline_mode<synchronous>, transform_indices = @transform_4, window_bounds = array<i64: 32, 32>}, {pipeline_mode = #tpu.pipeline_mode<synchronous>, transform_indices = @transform_5, window_bounds = array<i64: 1, 32>}, {pipeline_mode = #tpu.pipeline_mode<synchronous>, transform_indices = @transform_6, window_bounds = array<i64: 1, 32>}, {pipeline_mode = #tpu.pipeline_mode<synchronous>, transform_indices = @transform_7, window_bounds = array<i64: 32, 64>}, {pipeline_mode = #tpu.pipeline_mode<synchronous>, transform_indices = @transform_8, window_bounds = array<i64: 1, 64>}, {pipeline_mode = #tpu.pipeline_mode<synchronous>, transform_indices = @transform_9, window_bounds = array<i64: 64, 32>}, {pipeline_mode = #tpu.pipeline_mode<synchronous>, transform_indices = @transform_10, window_bounds = array<i64: 1, 32>}, {pipeline_mode = #tpu.pipeline_mode<synchronous>, transform_indices = @transform_11, window_bounds = array<i64: 1, 32>}, {pipeline_mode = #tpu.pipeline_mode<synchronous>, transform_indices = @transform_12, window_bounds = array<i64: 1, 32>}, {transform_indices = @transform_13, window_bounds = array<i64: 1, 8, 32>}, {transform_indices = @transform_14, window_bounds = array<i64: 1, 4, 8, 8>}]} {
    %c0_i32 = arith.constant 0 : i32
    %0 = arith.cmpi eq, %arg1, %c0_i32 : i32
    %1 = arith.extui %0 : i1 to i32
    %c0_i32_0 = arith.constant 0 : i32
    %2 = arith.cmpi ne, %1, %c0_i32_0 : i32
    scf.if %2 {
      %c0_105 = arith.constant 0 : index
      %c0_106 = arith.constant 0 : index
      %c0_107 = arith.constant 0 : index
      %171 = vector.load %arg2[%c0_105, %c0_106, %c0_107] : memref<1x8x32xf32, #tpu.memory_space<vmem>>, vector<1x8x32xf32>
      %172 = vector.shape_cast %171 : vector<1x8x32xf32> to vector<8x32xf32>
      %c0_108 = arith.constant 0 : index
      %c0_109 = arith.constant 0 : index
      %173 = vector.load %arg4[%c0_108, %c0_109] : memref<32x32xf32, #tpu.memory_space<vmem>>, vector<32x32xf32>
      %cst_110 = arith.constant dense<0.000000e+00> : vector<8x32xf32>
      %174 = tpu.matmul %172, %173, %cst_110 {dimension_numbers = #tpu.dot_dimension_numbers<[1], [0], [0], [1], [0, 0, 1, 1], [], []>} : vector<8x32xf32>, vector<32x32xf32>, vector<8x32xf32> -> vector<8x32xf32>
      %c0_111 = arith.constant 0 : index
      %c0_112 = arith.constant 0 : index
      %175 = vector.load %arg17[%c0_111, %c0_112] : memref<8x32xf32, #tpu.memory_space<vmem>>, vector<8x32xf32>
      tpu.vector_store %arg17[%c0_111, %c0_112], %174 {strides = array<i32>} : memref<8x32xf32, #tpu.memory_space<vmem>>, vector<8x32xf32>,
      %c0_113 = arith.constant 0 : index
      %c0_114 = arith.constant 0 : index
      %176 = vector.load %arg5[%c0_113, %c0_114] : memref<32x32xf32, #tpu.memory_space<vmem>>, vector<32x32xf32>
      %cst_115 = arith.constant dense<0.000000e+00> : vector<8x32xf32>
      %177 = tpu.matmul %172, %176, %cst_115 {dimension_numbers = #tpu.dot_dimension_numbers<[1], [0], [0], [1], [0, 0, 1, 1], [], []>} : vector<8x32xf32>, vector<32x32xf32>, vector<8x32xf32> -> vector<8x32xf32>
      %c0_116 = arith.constant 0 : index
      %c0_117 = arith.constant 0 : index
      %178 = vector.load %arg18[%c0_116, %c0_117] : memref<8x32xf32, #tpu.memory_space<vmem>>, vector<8x32xf32>
      tpu.vector_store %arg18[%c0_116, %c0_117], %177 {strides = array<i32>} : memref<8x32xf32, #tpu.memory_space<vmem>>, vector<8x32xf32>,
    } else {
    }
    %c8_i32 = arith.constant 8 : i32
    %3 = arith.muli %arg1, %c8_i32 : i32
    %4 = tpu.assume_multiple %3, 8 : i32
    %c0 = arith.constant 0 : index
    %5 = arith.index_cast %4 : i32 to index
    %c0_1 = arith.constant 0 : index
    %6 = vector.load %arg2[%c0, %5, %c0_1] : memref<1x8x32xf32, #tpu.memory_space<vmem>>, vector<1x8x32xf32>
    %7 = vector.shape_cast %6 : vector<1x8x32xf32> to vector<8x32xf32>
    %c0_2 = arith.constant 0 : index
    %c0_3 = arith.constant 0 : index
    %8 = vector.load %arg3[%c0_2, %c0_3] : memref<32x32xf32, #tpu.memory_space<vmem>>, vector<32x32xf32>
    %cst = arith.constant dense<0.000000e+00> : vector<8x32xf32>
    %9 = tpu.matmul %7, %8, %cst {dimension_numbers = #tpu.dot_dimension_numbers<[1], [0], [0], [1], [0, 0, 1, 1], [], []>} : vector<8x32xf32>, vector<32x32xf32>, vector<8x32xf32> -> vector<8x32xf32>
    %c0_4 = arith.constant 0 : index
    %c0_5 = arith.constant 0 : index
    %10 = vector.load %arg19[%c0_4, %c0_5] : memref<8x32xf32, #tpu.memory_space<vmem>>, vector<8x32xf32>
    tpu.vector_store %arg19[%c0_4, %c0_5], %9 {strides = array<i32>} : memref<8x32xf32, #tpu.memory_space<vmem>>, vector<8x32xf32>,
    %c0_6 = arith.constant 0 : index
    %c0_7 = arith.constant 0 : index
    %11 = vector.load %arg19[%c0_6, %c0_7] : memref<8x32xf32, #tpu.memory_space<vmem>>, vector<8x8xf32>
    %c0_8 = arith.constant 0 : index
    %c0_9 = arith.constant 0 : index
    %12 = vector.load %arg17[%c0_8, %c0_9] : memref<8x32xf32, #tpu.memory_space<vmem>>, vector<8x8xf32>
    %c0_10 = arith.constant 0 : index
    %c0_11 = arith.constant 0 : index
    %13 = vector.load %arg18[%c0_10, %c0_11] : memref<8x32xf32, #tpu.memory_space<vmem>>, vector<8x8xf32>
    %cst_12 = arith.constant dense<0.000000e+00> : vector<8x8xf32>
    %14 = tpu.matmul %11, %12, %cst_12 {dimension_numbers = #tpu.dot_dimension_numbers<[1], [1], [0], [0], [0, 0, 1, 0], [], []>} : vector<8x8xf32>, vector<8x8xf32>, vector<8x8xf32> -> vector<8x8xf32>
    %cst_13 = arith.constant dense<0xFF800000> : vector<8xf32>
    %15 = vector.multi_reduction <maximumf>, %14, %cst_13 [1] : vector<8x8xf32> to vector<8xf32>
    %16 = vector.shape_cast %15 : vector<8xf32> to vector<8x1xf32>
    %17 = vector.broadcast %16 : vector<8x1xf32> to vector<8x8xf32>
    %18 = arith.subf %14, %17 : vector<8x8xf32>
    %19 = math.exp %18 : vector<8x8xf32>
    %cst_14 = arith.constant dense<0.000000e+00> : vector<8xf32>
    %20 = vector.multi_reduction <add>, %19, %cst_14 [1] : vector<8x8xf32> to vector<8xf32>
    %21 = vector.shape_cast %20 : vector<8xf32> to vector<8x1xf32>
    %cst_15 = arith.constant 1.000000e+00 : f32
    %22 = vector.broadcast %cst_15 : f32 to vector<8x1xf32>
    %23 = arith.divf %22, %21 : vector<8x1xf32>
    %24 = vector.broadcast %23 : vector<8x1xf32> to vector<8x8xf32>
    %25 = arith.mulf %19, %24 : vector<8x8xf32>
    %c0_16 = arith.constant 0 : index
    %c0_17 = arith.constant 0 : index
    %c0_18 = arith.constant 0 : index
    %c0_19 = arith.constant 0 : index
    %26 = vector.load %arg16[%c0_16, %c0_17, %c0_18, %c0_19] : memref<1x4x8x8xf32, #tpu.memory_space<vmem>>, vector<1x1x8x8xf32>
    %27 = vector.shape_cast %26 : vector<1x1x8x8xf32> to vector<8x8xf32>
    %28 = vector.shape_cast %25 : vector<8x8xf32> to vector<1x1x8x8xf32>
    tpu.vector_store %arg16[%c0_16, %c0_17, %c0_18, %c0_19], %28 {strides = array<i32>} : memref<1x4x8x8xf32, #tpu.memory_space<vmem>>, vector<1x1x8x8xf32>,
    %cst_20 = arith.constant dense<0.000000e+00> : vector<8x8xf32>
    %29 = tpu.matmul %25, %13, %cst_20 {dimension_numbers = #tpu.dot_dimension_numbers<[1], [0], [0], [1], [0, 0, 1, 1], [], []>} : vector<8x8xf32>, vector<8x8xf32>, vector<8x8xf32> -> vector<8x8xf32>
    %c0_21 = arith.constant 0 : index
    %c0_22 = arith.constant 0 : index
    %30 = vector.load %arg20[%c0_21, %c0_22] : memref<8x32xf32, #tpu.memory_space<vmem>>, vector<8x8xf32>
    tpu.vector_store %arg20[%c0_21, %c0_22], %29 {strides = array<i32>} : memref<8x32xf32, #tpu.memory_space<vmem>>, vector<8x8xf32>,
    %c0_23 = arith.constant 0 : index
    %c8 = arith.constant 8 : index
    %31 = vector.load %arg19[%c0_23, %c8] : memref<8x32xf32, #tpu.memory_space<vmem>>, vector<8x8xf32>
    %c0_24 = arith.constant 0 : index
    %c8_25 = arith.constant 8 : index
    %32 = vector.load %arg17[%c0_24, %c8_25] : memref<8x32xf32, #tpu.memory_space<vmem>>, vector<8x8xf32>
    %c0_26 = arith.constant 0 : index
    %c8_27 = arith.constant 8 : index
    %33 = vector.load %arg18[%c0_26, %c8_27] : memref<8x32xf32, #tpu.memory_space<vmem>>, vector<8x8xf32>
    %cst_28 = arith.constant dense<0.000000e+00> : vector<8x8xf32>
    %34 = tpu.matmul %31, %32, %cst_28 {dimension_numbers = #tpu.dot_dimension_numbers<[1], [1], [0], [0], [0, 0, 1, 0], [], []>} : vector<8x8xf32>, vector<8x8xf32>, vector<8x8xf32> -> vector<8x8xf32>
    %cst_29 = arith.constant dense<0xFF800000> : vector<8xf32>
    %35 = vector.multi_reduction <maximumf>, %34, %cst_29 [1] : vector<8x8xf32> to vector<8xf32>
    %36 = vector.shape_cast %35 : vector<8xf32> to vector<8x1xf32>
    %37 = vector.broadcast %36 : vector<8x1xf32> to vector<8x8xf32>
    %38 = arith.subf %34, %37 : vector<8x8xf32>
    %39 = math.exp %38 : vector<8x8xf32>
    %cst_30 = arith.constant dense<0.000000e+00> : vector<8xf32>
    %40 = vector.multi_reduction <add>, %39, %cst_30 [1] : vector<8x8xf32> to vector<8xf32>
    %41 = vector.shape_cast %40 : vector<8xf32> to vector<8x1xf32>
    %cst_31 = arith.constant 1.000000e+00 : f32
    %42 = vector.broadcast %cst_31 : f32 to vector<8x1xf32>
    %43 = arith.divf %42, %41 : vector<8x1xf32>
    %44 = vector.broadcast %43 : vector<8x1xf32> to vector<8x8xf32>
    %45 = arith.mulf %39, %44 : vector<8x8xf32>
    %c0_32 = arith.constant 0 : index
    %c1 = arith.constant 1 : index
    %c0_33 = arith.constant 0 : index
    %c0_34 = arith.constant 0 : index
    %46 = vector.load %arg16[%c0_32, %c1, %c0_33, %c0_34] : memref<1x4x8x8xf32, #tpu.memory_space<vmem>>, vector<1x1x8x8xf32>
    %47 = vector.shape_cast %46 : vector<1x1x8x8xf32> to vector<8x8xf32>
    %48 = vector.shape_cast %45 : vector<8x8xf32> to vector<1x1x8x8xf32>
    tpu.vector_store %arg16[%c0_32, %c1, %c0_33, %c0_34], %48 {strides = array<i32>} : memref<1x4x8x8xf32, #tpu.memory_space<vmem>>, vector<1x1x8x8xf32>,
    %cst_35 = arith.constant dense<0.000000e+00> : vector<8x8xf32>
    %49 = tpu.matmul %45, %33, %cst_35 {dimension_numbers = #tpu.dot_dimension_numbers<[1], [0], [0], [1], [0, 0, 1, 1], [], []>} : vector<8x8xf32>, vector<8x8xf32>, vector<8x8xf32> -> vector<8x8xf32>
    %c0_36 = arith.constant 0 : index
    %c8_37 = arith.constant 8 : index
    %50 = vector.load %arg20[%c0_36, %c8_37] : memref<8x32xf32, #tpu.memory_space<vmem>>, vector<8x8xf32>
    tpu.vector_store %arg20[%c0_36, %c8_37], %49 {strides = array<i32>} : memref<8x32xf32, #tpu.memory_space<vmem>>, vector<8x8xf32>,
    %c0_38 = arith.constant 0 : index
    %c16 = arith.constant 16 : index
    %51 = vector.load %arg19[%c0_38, %c16] : memref<8x32xf32, #tpu.memory_space<vmem>>, vector<8x8xf32>
    %c0_39 = arith.constant 0 : index
    %c16_40 = arith.constant 16 : index
    %52 = vector.load %arg17[%c0_39, %c16_40] : memref<8x32xf32, #tpu.memory_space<vmem>>, vector<8x8xf32>
    %c0_41 = arith.constant 0 : index
    %c16_42 = arith.constant 16 : index
    %53 = vector.load %arg18[%c0_41, %c16_42] : memref<8x32xf32, #tpu.memory_space<vmem>>, vector<8x8xf32>
    %cst_43 = arith.constant dense<0.000000e+00> : vector<8x8xf32>
    %54 = tpu.matmul %51, %52, %cst_43 {dimension_numbers = #tpu.dot_dimension_numbers<[1], [1], [0], [0], [0, 0, 1, 0], [], []>} : vector<8x8xf32>, vector<8x8xf32>, vector<8x8xf32> -> vector<8x8xf32>
    %cst_44 = arith.constant dense<0xFF800000> : vector<8xf32>
    %55 = vector.multi_reduction <maximumf>, %54, %cst_44 [1] : vector<8x8xf32> to vector<8xf32>
    %56 = vector.shape_cast %55 : vector<8xf32> to vector<8x1xf32>
    %57 = vector.broadcast %56 : vector<8x1xf32> to vector<8x8xf32>
    %58 = arith.subf %54, %57 : vector<8x8xf32>
    %59 = math.exp %58 : vector<8x8xf32>
    %cst_45 = arith.constant dense<0.000000e+00> : vector<8xf32>
    %60 = vector.multi_reduction <add>, %59, %cst_45 [1] : vector<8x8xf32> to vector<8xf32>
    %61 = vector.shape_cast %60 : vector<8xf32> to vector<8x1xf32>
    %cst_46 = arith.constant 1.000000e+00 : f32
    %62 = vector.broadcast %cst_46 : f32 to vector<8x1xf32>
    %63 = arith.divf %62, %61 : vector<8x1xf32>
    %64 = vector.broadcast %63 : vector<8x1xf32> to vector<8x8xf32>
    %65 = arith.mulf %59, %64 : vector<8x8xf32>
    %c0_47 = arith.constant 0 : index
    %c2 = arith.constant 2 : index
    %c0_48 = arith.constant 0 : index
    %c0_49 = arith.constant 0 : index
    %66 = vector.load %arg16[%c0_47, %c2, %c0_48, %c0_49] : memref<1x4x8x8xf32, #tpu.memory_space<vmem>>, vector<1x1x8x8xf32>
    %67 = vector.shape_cast %66 : vector<1x1x8x8xf32> to vector<8x8xf32>
    %68 = vector.shape_cast %65 : vector<8x8xf32> to vector<1x1x8x8xf32>
    tpu.vector_store %arg16[%c0_47, %c2, %c0_48, %c0_49], %68 {strides = array<i32>} : memref<1x4x8x8xf32, #tpu.memory_space<vmem>>, vector<1x1x8x8xf32>,
    %cst_50 = arith.constant dense<0.000000e+00> : vector<8x8xf32>
    %69 = tpu.matmul %65, %53, %cst_50 {dimension_numbers = #tpu.dot_dimension_numbers<[1], [0], [0], [1], [0, 0, 1, 1], [], []>} : vector<8x8xf32>, vector<8x8xf32>, vector<8x8xf32> -> vector<8x8xf32>
    %c0_51 = arith.constant 0 : index
    %c16_52 = arith.constant 16 : index
    %70 = vector.load %arg20[%c0_51, %c16_52] : memref<8x32xf32, #tpu.memory_space<vmem>>, vector<8x8xf32>
    tpu.vector_store %arg20[%c0_51, %c16_52], %69 {strides = array<i32>} : memref<8x32xf32, #tpu.memory_space<vmem>>, vector<8x8xf32>,
    %c0_53 = arith.constant 0 : index
    %c24 = arith.constant 24 : index
    %71 = vector.load %arg19[%c0_53, %c24] : memref<8x32xf32, #tpu.memory_space<vmem>>, vector<8x8xf32>
    %c0_54 = arith.constant 0 : index
    %c24_55 = arith.constant 24 : index
    %72 = vector.load %arg17[%c0_54, %c24_55] : memref<8x32xf32, #tpu.memory_space<vmem>>, vector<8x8xf32>
    %c0_56 = arith.constant 0 : index
    %c24_57 = arith.constant 24 : index
    %73 = vector.load %arg18[%c0_56, %c24_57] : memref<8x32xf32, #tpu.memory_space<vmem>>, vector<8x8xf32>
    %cst_58 = arith.constant dense<0.000000e+00> : vector<8x8xf32>
    %74 = tpu.matmul %71, %72, %cst_58 {dimension_numbers = #tpu.dot_dimension_numbers<[1], [1], [0], [0], [0, 0, 1, 0], [], []>} : vector<8x8xf32>, vector<8x8xf32>, vector<8x8xf32> -> vector<8x8xf32>
    %cst_59 = arith.constant dense<0xFF800000> : vector<8xf32>
    %75 = vector.multi_reduction <maximumf>, %74, %cst_59 [1] : vector<8x8xf32> to vector<8xf32>
    %76 = vector.shape_cast %75 : vector<8xf32> to vector<8x1xf32>
    %77 = vector.broadcast %76 : vector<8x1xf32> to vector<8x8xf32>
    %78 = arith.subf %74, %77 : vector<8x8xf32>
    %79 = math.exp %78 : vector<8x8xf32>
    %cst_60 = arith.constant dense<0.000000e+00> : vector<8xf32>
    %80 = vector.multi_reduction <add>, %79, %cst_60 [1] : vector<8x8xf32> to vector<8xf32>
    %81 = vector.shape_cast %80 : vector<8xf32> to vector<8x1xf32>
    %cst_61 = arith.constant 1.000000e+00 : f32
    %82 = vector.broadcast %cst_61 : f32 to vector<8x1xf32>
    %83 = arith.divf %82, %81 : vector<8x1xf32>
    %84 = vector.broadcast %83 : vector<8x1xf32> to vector<8x8xf32>
    %85 = arith.mulf %79, %84 : vector<8x8xf32>
    %c0_62 = arith.constant 0 : index
    %c3 = arith.constant 3 : index
    %c0_63 = arith.constant 0 : index
    %c0_64 = arith.constant 0 : index
    %86 = vector.load %arg16[%c0_62, %c3, %c0_63, %c0_64] : memref<1x4x8x8xf32, #tpu.memory_space<vmem>>, vector<1x1x8x8xf32>
    %87 = vector.shape_cast %86 : vector<1x1x8x8xf32> to vector<8x8xf32>
    %88 = vector.shape_cast %85 : vector<8x8xf32> to vector<1x1x8x8xf32>
    tpu.vector_store %arg16[%c0_62, %c3, %c0_63, %c0_64], %88 {strides = array<i32>} : memref<1x4x8x8xf32, #tpu.memory_space<vmem>>, vector<1x1x8x8xf32>,
    %cst_65 = arith.constant dense<0.000000e+00> : vector<8x8xf32>
    %89 = tpu.matmul %85, %73, %cst_65 {dimension_numbers = #tpu.dot_dimension_numbers<[1], [0], [0], [1], [0, 0, 1, 1], [], []>} : vector<8x8xf32>, vector<8x8xf32>, vector<8x8xf32> -> vector<8x8xf32>
    %c0_66 = arith.constant 0 : index
    %c24_67 = arith.constant 24 : index
    %90 = vector.load %arg20[%c0_66, %c24_67] : memref<8x32xf32, #tpu.memory_space<vmem>>, vector<8x8xf32>
    tpu.vector_store %arg20[%c0_66, %c24_67], %89 {strides = array<i32>} : memref<8x32xf32, #tpu.memory_space<vmem>>, vector<8x8xf32>,
    %c0_68 = arith.constant 0 : index
    %c0_69 = arith.constant 0 : index
    %91 = vector.load %arg20[%c0_68, %c0_69] : memref<8x32xf32, #tpu.memory_space<vmem>>, vector<8x32xf32>
    %c0_70 = arith.constant 0 : index
    %c0_71 = arith.constant 0 : index
    %92 = vector.load %arg6[%c0_70, %c0_71] : memref<32x32xf32, #tpu.memory_space<vmem>>, vector<32x32xf32>
    %cst_72 = arith.constant dense<0.000000e+00> : vector<8x32xf32>
    %93 = tpu.matmul %91, %92, %cst_72 {dimension_numbers = #tpu.dot_dimension_numbers<[1], [0], [0], [1], [0, 0, 1, 1], [], []>} : vector<8x32xf32>, vector<32x32xf32>, vector<8x32xf32> -> vector<8x32xf32>
    %94 = arith.addf %93, %7 : vector<8x32xf32>
    %c0_73 = arith.constant 0 : index
    %c0_74 = arith.constant 0 : index
    %95 = vector.load %arg7[%c0_73, %c0_74] : memref<1x32xf32, #tpu.memory_space<vmem>>, vector<1x32xf32>
    %96 = vector.shape_cast %95 : vector<1x32xf32> to vector<32xf32>
    %c0_75 = arith.constant 0 : index
    %c0_76 = arith.constant 0 : index
    %97 = vector.load %arg8[%c0_75, %c0_76] : memref<1x32xf32, #tpu.memory_space<vmem>>, vector<1x32xf32>
    %98 = vector.shape_cast %97 : vector<1x32xf32> to vector<32xf32>
    %cst_77 = arith.constant dense<0.000000e+00> : vector<8xf32>
    %99 = vector.multi_reduction <add>, %94, %cst_77 [1] : vector<8x32xf32> to vector<8xf32>
    %100 = vector.shape_cast %99 : vector<8xf32> to vector<8x1xf32>
    %cst_78 = arith.constant 3.200000e+01 : f32
    %101 = vector.broadcast %cst_78 : f32 to vector<8x1xf32>
    %102 = arith.divf %100, %101 : vector<8x1xf32>
    %103 = vector.broadcast %102 : vector<8x1xf32> to vector<8x32xf32>
    %104 = arith.subf %94, %103 : vector<8x32xf32>
    %105 = arith.mulf %104, %104 : vector<8x32xf32>
    %cst_79 = arith.constant dense<0.000000e+00> : vector<8xf32>
    %106 = vector.multi_reduction <add>, %105, %cst_79 [1] : vector<8x32xf32> to vector<8xf32>
    %107 = vector.shape_cast %106 : vector<8xf32> to vector<8x1xf32>
    %cst_80 = arith.constant 3.200000e+01 : f32
    %108 = vector.broadcast %cst_80 : f32 to vector<8x1xf32>
    %109 = arith.divf %107, %108 : vector<8x1xf32>
    %110 = vector.broadcast %102 : vector<8x1xf32> to vector<8x32xf32>
    %111 = arith.subf %94, %110 : vector<8x32xf32>
    %cst_81 = arith.constant 9.99999997E-7 : f32
    %112 = vector.broadcast %cst_81 : f32 to vector<8x1xf32>
    %113 = arith.addf %109, %112 : vector<8x1xf32>
    %114 = math.rsqrt %113 : vector<8x1xf32>
    %115 = vector.broadcast %114 : vector<8x1xf32> to vector<8x32xf32>
    %116 = arith.mulf %111, %115 : vector<8x32xf32>
    %117 = vector.shape_cast %96 : vector<32xf32> to vector<1x32xf32>
    %118 = vector.broadcast %117 : vector<1x32xf32> to vector<8x32xf32>
    %119 = arith.mulf %116, %118 : vector<8x32xf32>
    %120 = vector.shape_cast %98 : vector<32xf32> to vector<1x32xf32>
    %121 = vector.broadcast %120 : vector<1x32xf32> to vector<8x32xf32>
    %122 = arith.addf %119, %121 : vector<8x32xf32>
    %c0_82 = arith.constant 0 : index
    %c0_83 = arith.constant 0 : index
    %123 = vector.load %arg9[%c0_82, %c0_83] : memref<32x64xf32, #tpu.memory_space<vmem>>, vector<32x64xf32>
    %cst_84 = arith.constant dense<0.000000e+00> : vector<8x64xf32>
    %124 = tpu.matmul %122, %123, %cst_84 {dimension_numbers = #tpu.dot_dimension_numbers<[1], [0], [0], [1], [0, 0, 1, 1], [], []>} : vector<8x32xf32>, vector<32x64xf32>, vector<8x64xf32> -> vector<8x64xf32>
    %c0_85 = arith.constant 0 : index
    %c0_86 = arith.constant 0 : index
    %125 = vector.load %arg10[%c0_85, %c0_86] : memref<1x64xf32, #tpu.memory_space<vmem>>, vector<1x64xf32>
    %126 = vector.shape_cast %125 : vector<1x64xf32> to vector<64xf32>
    %127 = vector.shape_cast %126 : vector<64xf32> to vector<1x64xf32>
    %128 = vector.broadcast %127 : vector<1x64xf32> to vector<8x64xf32>
    %129 = arith.addf %124, %128 : vector<8x64xf32>
    %cst_87 = arith.constant 0.000000e+00 : f32
    %130 = vector.broadcast %cst_87 : f32 to vector<8x64xf32>
    %131 = arith.maximumf %129, %130 : vector<8x64xf32>
    %c0_88 = arith.constant 0 : index
    %c0_89 = arith.constant 0 : index
    %132 = vector.load %arg11[%c0_88, %c0_89] : memref<64x32xf32, #tpu.memory_space<vmem>>, vector<64x32xf32>
    %cst_90 = arith.constant dense<0.000000e+00> : vector<8x32xf32>
    %133 = tpu.matmul %131, %132, %cst_90 {dimension_numbers = #tpu.dot_dimension_numbers<[1], [0], [0], [1], [0, 0, 1, 1], [], []>} : vector<8x64xf32>, vector<64x32xf32>, vector<8x32xf32> -> vector<8x32xf32>
    %c0_91 = arith.constant 0 : index
    %c0_92 = arith.constant 0 : index
    %134 = vector.load %arg12[%c0_91, %c0_92] : memref<1x32xf32, #tpu.memory_space<vmem>>, vector<1x32xf32>
    %135 = vector.shape_cast %134 : vector<1x32xf32> to vector<32xf32>
    %136 = vector.shape_cast %135 : vector<32xf32> to vector<1x32xf32>
    %137 = vector.broadcast %136 : vector<1x32xf32> to vector<8x32xf32>
    %138 = arith.addf %133, %137 : vector<8x32xf32>
    %139 = arith.addf %138, %122 : vector<8x32xf32>
    %c0_93 = arith.constant 0 : index
    %c0_94 = arith.constant 0 : index
    %140 = vector.load %arg13[%c0_93, %c0_94] : memref<1x32xf32, #tpu.memory_space<vmem>>, vector<1x32xf32>
    %141 = vector.shape_cast %140 : vector<1x32xf32> to vector<32xf32>
    %c0_95 = arith.constant 0 : index
    %c0_96 = arith.constant 0 : index
    %142 = vector.load %arg14[%c0_95, %c0_96] : memref<1x32xf32, #tpu.memory_space<vmem>>, vector<1x32xf32>
    %143 = vector.shape_cast %142 : vector<1x32xf32> to vector<32xf32>
    %cst_97 = arith.constant dense<0.000000e+00> : vector<8xf32>
    %144 = vector.multi_reduction <add>, %139, %cst_97 [1] : vector<8x32xf32> to vector<8xf32>
    %145 = vector.shape_cast %144 : vector<8xf32> to vector<8x1xf32>
    %cst_98 = arith.constant 3.200000e+01 : f32
    %146 = vector.broadcast %cst_98 : f32 to vector<8x1xf32>
    %147 = arith.divf %145, %146 : vector<8x1xf32>
    %148 = vector.broadcast %147 : vector<8x1xf32> to vector<8x32xf32>
    %149 = arith.subf %139, %148 : vector<8x32xf32>
    %150 = arith.mulf %149, %149 : vector<8x32xf32>
    %cst_99 = arith.constant dense<0.000000e+00> : vector<8xf32>
    %151 = vector.multi_reduction <add>, %150, %cst_99 [1] : vector<8x32xf32> to vector<8xf32>
    %152 = vector.shape_cast %151 : vector<8xf32> to vector<8x1xf32>
    %cst_100 = arith.constant 3.200000e+01 : f32
    %153 = vector.broadcast %cst_100 : f32 to vector<8x1xf32>
    %154 = arith.divf %152, %153 : vector<8x1xf32>
    %155 = vector.broadcast %147 : vector<8x1xf32> to vector<8x32xf32>
    %156 = arith.subf %139, %155 : vector<8x32xf32>
    %cst_101 = arith.constant 9.99999997E-7 : f32
    %157 = vector.broadcast %cst_101 : f32 to vector<8x1xf32>
    %158 = arith.addf %154, %157 : vector<8x1xf32>
    %159 = math.rsqrt %158 : vector<8x1xf32>
    %160 = vector.broadcast %159 : vector<8x1xf32> to vector<8x32xf32>
    %161 = arith.mulf %156, %160 : vector<8x32xf32>
    %162 = vector.shape_cast %141 : vector<32xf32> to vector<1x32xf32>
    %163 = vector.broadcast %162 : vector<1x32xf32> to vector<8x32xf32>
    %164 = arith.mulf %161, %163 : vector<8x32xf32>
    %165 = vector.shape_cast %143 : vector<32xf32> to vector<1x32xf32>
    %166 = vector.broadcast %165 : vector<1x32xf32> to vector<8x32xf32>
    %167 = arith.addf %164, %166 : vector<8x32xf32>
    %c0_102 = arith.constant 0 : index
    %c0_103 = arith.constant 0 : index
    %c0_104 = arith.constant 0 : index
    %168 = vector.load %arg15[%c0_102, %c0_103, %c0_104] : memref<1x8x32xf32, #tpu.memory_space<vmem>>, vector<1x8x32xf32>
    %169 = vector.shape_cast %168 : vector<1x8x32xf32> to vector<8x32xf32>
    %170 = vector.shape_cast %167 : vector<8x32xf32> to vector<1x8x32xf32>
    tpu.vector_store %arg15[%c0_102, %c0_103, %c0_104], %170 {strides = array<i32>} : memref<1x8x32xf32, #tpu.memory_space<vmem>>, vector<1x8x32xf32>,
    return
  }
  func.func @transform_0(%arg0: i32, %arg1: i32) -> (i32, i32, i32) {
    %c0_i32 = arith.constant 0 : i32
    %c0_i32_0 = arith.constant 0 : i32
    %c0_i32_1 = arith.constant 0 : i32
    return %arg0, %c0_i32, %c0_i32_0 : i32, i32, i32
  }
  func.func @transform_1(%arg0: i32, %arg1: i32) -> (i32, i32) {
    %c0_i32 = arith.constant 0 : i32
    %c0_i32_0 = arith.constant 0 : i32
    %c0_i32_1 = arith.constant 0 : i32
    return %c0_i32, %c0_i32_0 : i32, i32
  }
  func.func @transform_2(%arg0: i32, %arg1: i32) -> (i32, i32) {
    %c0_i32 = arith.constant 0 : i32
    %c0_i32_0 = arith.constant 0 : i32
    %c0_i32_1 = arith.constant 0 : i32
    return %c0_i32, %c0_i32_0 : i32, i32
  }
  func.func @transform_3(%arg0: i32, %arg1: i32) -> (i32, i32) {
    %c0_i32 = arith.constant 0 : i32
    %c0_i32_0 = arith.constant 0 : i32
    %c0_i32_1 = arith.constant 0 : i32
    return %c0_i32, %c0_i32_0 : i32, i32
  }
  func.func @transform_4(%arg0: i32, %arg1: i32) -> (i32, i32) {
    %c0_i32 = arith.constant 0 : i32
    %c0_i32_0 = arith.constant 0 : i32
    %c0_i32_1 = arith.constant 0 : i32
    return %c0_i32, %c0_i32_0 : i32, i32
  }
  func.func @transform_5(%arg0: i32, %arg1: i32) -> (i32, i32) {
    %c0_i32 = arith.constant 0 : i32
    %c0_i32_0 = arith.constant 0 : i32
    %c0_i32_1 = arith.constant 0 : i32
    return %c0_i32, %c0_i32_0 : i32, i32
  }
  func.func @transform_6(%arg0: i32, %arg1: i32) -> (i32, i32) {
    %c0_i32 = arith.constant 0 : i32
    %c0_i32_0 = arith.constant 0 : i32
    %c0_i32_1 = arith.constant 0 : i32
    return %c0_i32, %c0_i32_0 : i32, i32
  }
  func.func @transform_7(%arg0: i32, %arg1: i32) -> (i32, i32) {
    %c0_i32 = arith.constant 0 : i32
    %c0_i32_0 = arith.constant 0 : i32
    %c0_i32_1 = arith.constant 0 : i32
    return %c0_i32, %c0_i32_0 : i32, i32
  }
  func.func @transform_8(%arg0: i32, %arg1: i32) -> (i32, i32) {
    %c0_i32 = arith.constant 0 : i32
    %c0_i32_0 = arith.constant 0 : i32
    %c0_i32_1 = arith.constant 0 : i32
    return %c0_i32, %c0_i32_0 : i32, i32
  }
  func.func @transform_9(%arg0: i32, %arg1: i32) -> (i32, i32) {
    %c0_i32 = arith.constant 0 : i32
    %c0_i32_0 = arith.constant 0 : i32
    %c0_i32_1 = arith.constant 0 : i32
    return %c0_i32, %c0_i32_0 : i32, i32
  }
  func.func @transform_10(%arg0: i32, %arg1: i32) -> (i32, i32) {
    %c0_i32 = arith.constant 0 : i32
    %c0_i32_0 = arith.constant 0 : i32
    %c0_i32_1 = arith.constant 0 : i32
    return %c0_i32, %c0_i32_0 : i32, i32
  }
  func.func @transform_11(%arg0: i32, %arg1: i32) -> (i32, i32) {
    %c0_i32 = arith.constant 0 : i32
    %c0_i32_0 = arith.constant 0 : i32
    %c0_i32_1 = arith.constant 0 : i32
    return %c0_i32, %c0_i32_0 : i32, i32
  }
  func.func @transform_12(%arg0: i32, %arg1: i32) -> (i32, i32) {
    %c0_i32 = arith.constant 0 : i32
    %c0_i32_0 = arith.constant 0 : i32
    %c0_i32_1 = arith.constant 0 : i32
    return %c0_i32, %c0_i32_0 : i32, i32
  }
  func.func @transform_13(%arg0: i32, %arg1: i32) -> (i32, i32, i32) {
    %c0_i32 = arith.constant 0 : i32
    %c0_i32_0 = arith.constant 0 : i32
    return %arg0, %arg1, %c0_i32 : i32, i32, i32
  }
  func.func @transform_14(%arg0: i32, %arg1: i32) -> (i32, i32, i32, i32) {
    %c0_i32 = arith.constant 0 : i32
    %c0_i32_0 = arith.constant 0 : i32
    %c0_i32_1 = arith.constant 0 : i32
    return %arg0, %c0_i32, %arg1, %c0_i32_0 : i32, i32, i32, i32
  }
}

</mosaic_0001>

<llo_original>
// kernel: tpu_custom_call.1
$region0: #{tpu_custom_call.1}
  #allocation0 [shape = 'u32[]', space=smem, size = 0x4, offset = 0x4, fixed_abs, tag = 'smem constant byte address 0x4 - core index']
  #allocation1 [shape = 'u32[144,128]{1,0:T(1,128)}', space=vmem, size = 0x12000, scoped, tag = 'internal scratch']
  %s0 = inlined_call_operand.hbm [shape: f32[16,128], index: 0, kind: input, shape index: {}]
  %s1 = inlined_call_operand.vmem [shape: f32[1,128], index: 1, kind: input, shape index: {}]
  %s2 = inlined_call_operand.hbm [shape: f32[16,128], index: 2, kind: output, shape index: {}]
  %s3 = sld [smem:[#allocation0]]
  $region45: #{tpu_custom_call.1} parent=0
    _
  %s5 = ssub.s32 1, %s3
  %s6 = scalar_select 0, %s5, %s3
  $region1: #{tpu_custom_call.1} parent=0
    #allocation2 [shape = 'u8[8192]{0}', space=vmem, size = 0x2000, scoped, tag = 'input window, operand 0']
    #allocation3 [shape = 's32[2]{0}', space=sflag, size = 0x8, scoped, tag = 'scoped memory for tpu_custom_call.1']
    #allocation4 [shape = 's32[2]{0}', space=sflag, size = 0x8, scoped, tag = 'scoped memory for tpu_custom_call.1']
    #allocation5 [shape = 'u8[8192]{0}', space=vmem, size = 0x2000, scoped, tag = 'output window, operand 0']
    %7 = vsyncpa [#allocation3], 0
    %s8 = scalar_lea.sflag [#allocation3], 1
    %9 = vsyncpa %s8, 0
    %10 = vsyncpa [#allocation4], 0
    %s11 = scalar_lea.sflag [#allocation4], 1
    %12 = vsyncpa %s11, 0
    loop: start=0, step=1, limit=4
    $region2: #{tpu_custom_call.1} parent=1 // loop_pre_header
      _
    $region3: #{tpu_custom_call.1} parent=1 // loop_header
      %s14 = sphi 0, %s18
      %p15 = scmp.ge.s32.totalorder %s14, 4
      %s24 = sphi 0, %s26
      %s27 = sphi 0, %s24
      %s28 = sphi 0, %s27
      %s44 = sphi 0, %s28
      %s48 = sphi 0, %s48
      %s50 = sphi 0, %s48
      %s51 = sphi 0, %s50
      %s65 = sphi 0, %s51
      %s71 = sphi 0, %s73
      %s74 = sphi 0, %s71
      %s75 = sphi 0, %s74
      %s91 = sphi 0, %s75
    $region4: #{tpu_custom_call.1} parent=1 // loop_header_branch
      %17 = sbr.rel (%p15) target = $region8
    $region5: #{tpu_custom_call.1} parent=1 // loop_body
      %s19 = ssub.s32 %s14, 1
      %s20 = ssub.s32 %s14, 2
      %s21 = sadd.s32 %s14, 1
      %s22 = ssub.s32 %s14, %s21
      %p23 = scmp.eq.s32.totalorder %s22, 0
      %s25 = sadd.s32 %s24, 1
      %s26 = scalar_select %p23, %s24, %s25
      %p29 = pneg %p23
      %p30 = scmp.eq.s32.totalorder %s14, 1
      %p31 = por %p29, %p30
      %p32 = scmp.ne.s32.totalorder %s24, %s27
      %p33 = scmp.eq.s32.totalorder %s14, 0
      %p34 = por %p32, %p33
      %p35 = scmp.ne.s32.totalorder %s24, %s27
      %p36 = scmp.eq.s32.totalorder %s19, 1
      %p37 = por %p35, %p36
      %p38 = scmp.ne.s32.totalorder %s27, %s28
      %p39 = scmp.eq.s32.totalorder %s19, 0
      %p40 = por %p38, %p39
      %p41 = scmp.ne.s32.totalorder %s27, %s28
      %p42 = scmp.eq.s32.totalorder %s20, 1
      %p43 = por %p41, %p42
      %p45 = scmp.ne.s32.totalorder %s28, %s44
      %p46 = scmp.eq.s32.totalorder %s20, 0
      %p47 = por %p45, %p46
      %s49 = sadd.s32 %s48, 1
      %p52 = scmp.eq.s32.totalorder %s14, 1
      %p53 = scmp.ne.s32.totalorder %s48, %s50
      %p54 = scmp.eq.s32.totalorder %s14, 0
      %p55 = por %p53, %p54
      %p56 = scmp.ne.s32.totalorder %s48, %s50
      %p57 = scmp.eq.s32.totalorder %s19, 1
      %p58 = por %p56, %p57
      %p59 = scmp.ne.s32.totalorder %s50, %s51
      %p60 = scmp.eq.s32.totalorder %s19, 0
      %p61 = por %p59, %p60
      %p62 = scmp.ne.s32.totalorder %s50, %s51
      %p63 = scmp.eq.s32.totalorder %s20, 1
      %p64 = por %p62, %p63
      %p66 = scmp.ne.s32.totalorder %s51, %s65
      %p67 = scmp.eq.s32.totalorder %s20, 0
      %p68 = por %p66, %p67
      %s69 = ssub.s32 %s14, %s21
      %p70 = scmp.eq.s32.totalorder %s69, 0
      %s72 = sadd.s32 %s71, 1
      %s73 = scalar_select %p70, %s71, %s72
      %p76 = pneg %p70
      %p77 = scmp.eq.s32.totalorder %s14, 1
      %p78 = por %p76, %p77
      %p79 = scmp.ne.s32.totalorder %s71, %s74
      %p80 = scmp.eq.s32.totalorder %s14, 0
      %p81 = por %p79, %p80
      %p82 = scmp.ne.s32.totalorder %s71, %s74
      %p83 = scmp.eq.s32.totalorder %s19, 1
      %p84 = por %p82, %p83
      %p85 = scmp.ne.s32.totalorder %s74, %s75
      %p86 = scmp.eq.s32.totalorder %s19, 0
      %p87 = por %p85, %p86
      %p88 = scmp.ne.s32.totalorder %s74, %s75
      %p89 = scmp.eq.s32.totalorder %s20, 1
      %p90 = por %p88, %p89
      %p92 = scmp.ne.s32.totalorder %s75, %s91
      %p93 = scmp.eq.s32.totalorder %s20, 0
      %p94 = por %p92, %p93
      %p95 = scmp.le.s32.totalorder 1, %s14
      %p96 = scmp.lt.s32.totalorder %s14, 3
      %p97 = pnand %p95, %p96
      %p98 = pneg %p97
      // Predicated region
      $region9: #{tpu_custom_call.1} parent=5 // pred_check
        _
      $region10: #{tpu_custom_call.1} parent=5 // pred_check_branch
        %100 = sbr.rel (%p97) target = $region12
      $region11: #{tpu_custom_call.1} parent=5 // pred_region
        %s101 = ssub.s32 %s14, 1
        // Predicated region
        $region13: #{tpu_custom_call.1} parent=11 // pred_check
          %p102 = pneg %p61
        $region14: #{tpu_custom_call.1} parent=11 // pred_check_branch
          %104 = sbr.rel (%p102) target = $region16
        $region15: #{tpu_custom_call.1} parent=11 // pred_region
          _
        $region16: #{tpu_custom_call.1} parent=11 // pred_fallthru
          _
      $region12: #{tpu_custom_call.1} parent=5 // pred_fallthru
        _
      %p105 = scmp.lt.s32.totalorder %s14, 2
      // Predicated region
      $region17: #{tpu_custom_call.1} parent=5 // pred_check
        %p106 = pneg %p105
      $region18: #{tpu_custom_call.1} parent=5 // pred_check_branch
        %108 = sbr.rel (%p106) target = $region20
      $region19: #{tpu_custom_call.1} parent=5 // pred_region
        // Predicated region
        $region21: #{tpu_custom_call.1} parent=19 // pred_check
          %p109 = pneg %p34
        $region22: #{tpu_custom_call.1} parent=19 // pred_check_branch
          %111 = sbr.rel (%p109) target = $region24
        $region23: #{tpu_custom_call.1} parent=19 // pred_region
          %s112 = sand.u32 %s24, 1
          %s113 = scalar_lea.sflag [#allocation3], %s112
          %s114 = sand.u32 %s24, 1
          %s115 = smul.addr %s114, 8
          %s116 = scalar_lea.vmem [#allocation2], %s115
          %s118 = ssub.s32 128, 128
          %119 = vsyncadd %s113, %s118
          %s120 = smul.addr %s14, 128
          %s121 = scalar_lea.hbm %s0, %s120
          %s123 = sshll.u32 %s116, 4
          %s124 = int_to_ptr.vmem [resolvable:$true] %s123
          %126 = dma.hbm_to_vmem [thread:$0]  %s121, 128, %s124, %s113
        $region24: #{tpu_custom_call.1} parent=19 // pred_fallthru
          _
      $region20: #{tpu_custom_call.1} parent=5 // pred_fallthru
        _
      %p127 = scmp.le.s32.totalorder 1, %s14
      %p128 = scmp.lt.s32.totalorder %s14, 3
      %p129 = pnand %p127, %p128
      %p130 = pneg %p129
      // Predicated region
      $region25: #{tpu_custom_call.1} parent=5 // pred_check
        _
      $region26: #{tpu_custom_call.1} parent=5 // pred_check_branch
        %132 = sbr.rel (%p129) target = $region28
      $region27: #{tpu_custom_call.1} parent=5 // pred_region
        %s133 = ssub.s32 %s14, 1
        %s134 = sand.u32 %s27, 1
        %s135 = scalar_lea.sflag [#allocation3], %s134
        %s136 = sand.u32 %s27, 1
        %s137 = smul.addr %s136, 8
        %s138 = scalar_lea.vmem [#allocation2], %s137
        // Predicated region
        $region29: #{tpu_custom_call.1} parent=27 // pred_check
          %p139 = pneg %p40
        $region30: #{tpu_custom_call.1} parent=27 // pred_check_branch
          %141 = sbr.rel (%p139) target = $region32
        $region31: #{tpu_custom_call.1} parent=27 // pred_region
          %142 = dma.done %s135, 128
        $region32: #{tpu_custom_call.1} parent=27 // pred_fallthru
          _
        %s143 = sand.u32 %s27, 1
        %s144 = scalar_lea.sflag [#allocation3], %s143
        %s145 = sand.u32 %s27, 1
        %s146 = smul.addr %s145, 8
        %s147 = scalar_lea.vmem [#allocation2], %s146
        %p148 = pneg %p40
        %p149 = pneg %p37
        %p150 = pneg %p61
        %p151 = pneg %p58
        %p152 = pneg %p87
        %p153 = pneg %p84
        %s154 = sand.u32 %s74, 1
        %s155 = scalar_lea.sflag [#allocation4], %s154
        %s156 = sand.u32 %s74, 1
        %s157 = smul.addr %s156, 8
        %s158 = scalar_lea.vmem [#allocation5], %s157
        %v159 = vld [vmem:[%s138] sm:$0xff]
        %v160 = vld [vmem:[%s1] sm:$0x1]
        %v162 = vlaneseq
        %v163 = vshrl.u32 %v162, 7
        %v164 = vsub.s32 0, %v163
        %v165 = vrot.slane %v160, %v164
        %v167 = vadd.f32 %v159, %v165
        %168 = vst [vmem:[%s158] sm:$0xff] %v167
        %s169 = sand.u32 %s74, 1
        %s170 = scalar_lea.sflag [#allocation4], %s169
        %s171 = sand.u32 %s74, 1
        %s172 = smul.addr %s171, 8
        %s173 = scalar_lea.vmem [#allocation5], %s172
        // Predicated region
        $region33: #{tpu_custom_call.1} parent=27 // pred_check
          %p174 = pneg %p84
        $region34: #{tpu_custom_call.1} parent=27 // pred_check_branch
          %176 = sbr.rel (%p174) target = $region36
        $region35: #{tpu_custom_call.1} parent=27 // pred_region
          %s178 = ssub.s32 128, 128
          %179 = vsyncadd %s170, %s178
          %s180 = smul.addr %s19, 128
          %s181 = scalar_lea.hbm %s2, %s180
          %s183 = sshll.u32 %s173, 4
          %s184 = int_to_ptr.vmem [resolvable:$true] %s183
          %186 = dma.vmem_to_hbm [thread:$0]  %s184, 128, %s181, %s170
        $region36: #{tpu_custom_call.1} parent=27 // pred_fallthru
          _
      $region28: #{tpu_custom_call.1} parent=5 // pred_fallthru
        _
      %p187 = scmp.le.s32.totalorder 2, %s14
      // Predicated region
      $region37: #{tpu_custom_call.1} parent=5 // pred_check
        %p188 = pneg %p187
      $region38: #{tpu_custom_call.1} parent=5 // pred_check_branch
        %190 = sbr.rel (%p188) target = $region40
      $region39: #{tpu_custom_call.1} parent=5 // pred_region
        %s191 = ssub.s32 %s14, 2
        // Predicated region
        $region41: #{tpu_custom_call.1} parent=39 // pred_check
          %p192 = pneg %p90
        $region42: #{tpu_custom_call.1} parent=39 // pred_check_branch
          %194 = sbr.rel (%p192) target = $region44
        $region43: #{tpu_custom_call.1} parent=39 // pred_region
          %s195 = sand.u32 %s75, 1
          %s196 = scalar_lea.sflag [#allocation4], %s195
          %s197 = sand.u32 %s75, 1
          %s198 = smul.addr %s197, 8
          %s199 = scalar_lea.vmem [#allocation5], %s198
          %200 = dma.done %s196, 128
        $region44: #{tpu_custom_call.1} parent=39 // pred_fallthru
          _
      $region40: #{tpu_custom_call.1} parent=5 // pred_fallthru
        _
    $region6: #{tpu_custom_call.1} parent=1 // loop_footer
      %s18 = sadd.s32 1, %s14
    $region7: #{tpu_custom_call.1} parent=1 // loop_footer_branch
      %13 = sbr.rel target = $region3
    $region8: #{tpu_custom_call.1} parent=1 // loop_exit
      _
    %201 = vsyncpa [#allocation3], 1
    %s202 = scalar_lea.sflag [#allocation3], 1
    %203 = vsyncpa %s202, 1
    %204 = vsyncpa [#allocation4], 1
    %s205 = scalar_lea.sflag [#allocation4], 1
    %206 = vsyncpa %s205, 1

// kernel: tpu_custom_call.1
$region0: #{tpu_custom_call.1}
  #allocation0 [shape = 'u32[]', space=smem, size = 0x4, offset = 0x4, fixed_abs, tag = 'smem constant byte address 0x4 - core index']
  #allocation1 [shape = 'u32[144,128]{1,0:T(1,128)}', space=vmem, size = 0x12000, scoped, tag = 'internal scratch']
  #allocation2 [shape = 'f32[8,32]{1,0:T(8,128)}', space=vmem, size = 0x1000, scoped, tag = 'scratch operand']
  #allocation3 [shape = 'f32[8,32]{1,0:T(8,128)}', space=vmem, size = 0x1000, scoped, tag = 'scratch operand']
  #allocation4 [shape = 'f32[8,32]{1,0:T(8,128)}', space=vmem, size = 0x1000, scoped, tag = 'scratch operand']
  #allocation5 [shape = 'f32[8,32]{1,0:T(8,128)}', space=vmem, size = 0x1000, scoped, tag = 'scratch operand']
  %s0 = inlined_call_operand.hbm [shape: f32[2,8,32], index: 0, kind: input, shape index: {}]
  %s1 = inlined_call_operand.vmem [shape: f32[32,32], index: 1, kind: input, shape index: {}]
  %s2 = inlined_call_operand.vmem [shape: f32[32,32], index: 2, kind: input, shape index: {}]
  %s3 = inlined_call_operand.vmem [shape: f32[32,32], index: 3, kind: input, shape index: {}]
  %s4 = inlined_call_operand.hbm [shape: f32[32,32], index: 4, kind: input, shape index: {}]
  %s5 = inlined_call_operand.vmem [shape: f32[1,32], index: 5, kind: input, shape index: {}]
  %s6 = inlined_call_operand.vmem [shape: f32[1,32], index: 6, kind: input, shape index: {}]
  %s7 = inlined_call_operand.hbm [shape: f32[32,64], index: 7, kind: input, shape index: {}]
  %s8 = inlined_call_operand.vmem [shape: f32[1,64], index: 8, kind: input, shape index: {}]
  %s9 = inlined_call_operand.vmem [shape: f32[64,32], index: 9, kind: input, shape index: {}]
  %s10 = inlined_call_operand.vmem [shape: f32[1,32], index: 10, kind: input, shape index: {}]
  %s11 = inlined_call_operand.vmem [shape: f32[1,32], index: 11, kind: input, shape index: {}]
  %s12 = inlined_call_operand.vmem [shape: f32[1,32], index: 12, kind: input, shape index: {}]
  %s13 = inlined_call_operand.hbm [shape: f32[2,8,32], index: 13, kind: output, shape index: {0}]
  %s14 = inlined_call_operand.hbm [shape: f32[2,4,8,8], index: 14, kind: output, shape index: {1}]
  %15 = xla_tuple %s13, %s14
  %s16 = sld [smem:[#allocation0]]
  $region109: #{tpu_custom_call.1} parent=0
    _
  %s18 = ssub.s32 1, %s16
  %s19 = scalar_select 0, %s18, %s16
  $region1: #{tpu_custom_call.1} parent=0
    #allocation6 [shape = 'u8[8192]{0}', space=vmem, size = 0x2000, scoped, tag = 'input window, operand 0']
    #allocation7 [shape = 's32[2]{0}', space=sflag, size = 0x8, scoped, tag = 'scoped memory for tpu_custom_call.1']
    #allocation8 [shape = 's32[2]{0}', space=sflag, size = 0x8, scoped, tag = 'scoped memory for tpu_custom_call.1']
    #allocation9 [shape = 'u8[16384]{0}', space=vmem, size = 0x4000, scoped, tag = 'input window, operand 4, single buffered']
    #allocation10 [shape = 's32[1]{0}', space=sflag, size = 0x4, scoped, tag = 'scoped memory for tpu_custom_call.1']
    #allocation11 [shape = 'u8[16384]{0}', space=vmem, size = 0x4000, scoped, tag = 'input window, operand 7, single buffered']
    #allocation12 [shape = 'u8[8192]{0}', space=vmem, size = 0x2000, scoped, tag = 'output window, operand 0']
    #allocation13 [shape = 'u8[32768]{0}', space=vmem, size = 0x8000, scoped, tag = 'output window, operand 1']
    #allocation14 [shape = 's32[2]{0}', space=sflag, size = 0x8, scoped, tag = 'scoped memory for tpu_custom_call.1']
    %20 = vsyncpa [#allocation7], 0
    %s21 = scalar_lea.sflag [#allocation7], 1
    %22 = vsyncpa %s21, 0
    %23 = vsyncpa [#allocation10], 0
    %24 = vsyncpa [#allocation8], 0
    %s25 = scalar_lea.sflag [#allocation8], 1
    %26 = vsyncpa %s25, 0
    %27 = vsyncpa [#allocation14], 0
    %s28 = scalar_lea.sflag [#allocation14], 1
    %29 = vsyncpa %s28, 0
    loop: start=0, step=1, limit=4
    $region2: #{tpu_custom_call.1} parent=1 // loop_pre_header
      _
    $region3: #{tpu_custom_call.1} parent=1 // loop_header
      %s31 = sphi 0, %s35
      %p32 = scmp.ge.s32.totalorder %s31, 4
      %s38 = sphi 0, %s50
      %s39 = sphi 0, %s46
      %s40 = sphi 0, %s38
      %s41 = sphi 0, %s39
      %s42 = sphi 0, %s40
      %s43 = sphi 0, %s41
      %s53 = sphi 0, %s55
      %s56 = sphi 0, %s53
      %s57 = sphi 0, %s56
      %s73 = sphi 0, %s57
      %s77 = sphi 0, %s77
      %s79 = sphi 0, %s77
      %s80 = sphi 0, %s79
      %s94 = sphi 0, %s80
      %s98 = sphi 0, %s98
      %s100 = sphi 0, %s98
      %s101 = sphi 0, %s100
      %s115 = sphi 0, %s101
      %s119 = sphi 0, %s119
      %s121 = sphi 0, %s119
      %s122 = sphi 0, %s121
      %s136 = sphi 0, %s122
      %s140 = sphi 0, %s140
      %s142 = sphi 0, %s140
      %s143 = sphi 0, %s142
      %s157 = sphi 0, %s143
      %s161 = sphi 0, %s161
      %s163 = sphi 0, %s161
      %s164 = sphi 0, %s163
      %s178 = sphi 0, %s164
      %s182 = sphi 0, %s182
      %s184 = sphi 0, %s182
      %s185 = sphi 0, %s184
      %s199 = sphi 0, %s185
      %s203 = sphi 0, %s203
      %s205 = sphi 0, %s203
      %s206 = sphi 0, %s205
      %s220 = sphi 0, %s206
      %s224 = sphi 0, %s224
      %s226 = sphi 0, %s224
      %s227 = sphi 0, %s226
      %s241 = sphi 0, %s227
      %s245 = sphi 0, %s245
      %s247 = sphi 0, %s245
      %s248 = sphi 0, %s247
      %s262 = sphi 0, %s248
      %s266 = sphi 0, %s266
      %s268 = sphi 0, %s266
      %s269 = sphi 0, %s268
      %s283 = sphi 0, %s269
      %s287 = sphi 0, %s287
      %s289 = sphi 0, %s287
      %s290 = sphi 0, %s289
      %s304 = sphi 0, %s290
      %s308 = sphi 0, %s308
      %s310 = sphi 0, %s308
      %s311 = sphi 0, %s310
      %s325 = sphi 0, %s311
      %s333 = sphi 0, %s335
      %s336 = sphi 0, %s333
      %s337 = sphi 0, %s336
      %s353 = sphi 0, %s337
      %s361 = sphi 0, %s363
      %s364 = sphi 0, %s361
      %s365 = sphi 0, %s364
      %s381 = sphi 0, %s365
    $region4: #{tpu_custom_call.1} parent=1 // loop_header_branch
      %34 = sbr.rel (%p32) target = $region8
    $region5: #{tpu_custom_call.1} parent=1 // loop_body
      %s36 = ssub.s32 %s31, 1
      %s37 = ssub.s32 %s31, 2
      %s44 = sadd.s32 1, %s39
      %p45 = scmp.ge.s32.totalorder %s44, 1
      %s46 = scalar_select %p45, 0, %s44
      %s47 = sadd.s32 1, %s38
      %s48 = scalar_select %p45, %s47, %s38
      %p49 = scmp.ge.s32.totalorder %s48, 2
      %s50 = scalar_select %p49, 0, %s48
      %s51 = ssub.s32 %s38, %s50
      %p52 = scmp.eq.s32.totalorder %s51, 0
      %s54 = sadd.s32 %s53, 1
      %s55 = scalar_select %p52, %s53, %s54
      %p58 = pneg %p52
      %p59 = scmp.eq.s32.totalorder %s31, 1
      %p60 = por %p58, %p59
      %p61 = scmp.ne.s32.totalorder %s53, %s56
      %p62 = scmp.eq.s32.totalorder %s31, 0
      %p63 = por %p61, %p62
      %p64 = scmp.ne.s32.totalorder %s53, %s56
      %p65 = scmp.eq.s32.totalorder %s36, 1
      %p66 = por %p64, %p65
      %p67 = scmp.ne.s32.totalorder %s56, %s57
      %p68 = scmp.eq.s32.totalorder %s36, 0
      %p69 = por %p67, %p68
      %p70 = scmp.ne.s32.totalorder %s56, %s57
      %p71 = scmp.eq.s32.totalorder %s37, 1
      %p72 = por %p70, %p71
      %p74 = scmp.ne.s32.totalorder %s57, %s73
      %p75 = scmp.eq.s32.totalorder %s37, 0
      %p76 = por %p74, %p75
      %s78 = sadd.s32 %s77, 1
      %p81 = scmp.eq.s32.totalorder %s31, 1
      %p82 = scmp.ne.s32.totalorder %s77, %s79
      %p83 = scmp.eq.s32.totalorder %s31, 0
      %p84 = por %p82, %p83
      %p85 = scmp.ne.s32.totalorder %s77, %s79
      %p86 = scmp.eq.s32.totalorder %s36, 1
      %p87 = por %p85, %p86
      %p88 = scmp.ne.s32.totalorder %s79, %s80
      %p89 = scmp.eq.s32.totalorder %s36, 0
      %p90 = por %p88, %p89
      %p91 = scmp.ne.s32.totalorder %s79, %s80
      %p92 = scmp.eq.s32.totalorder %s37, 1
      %p93 = por %p91, %p92
      %p95 = scmp.ne.s32.totalorder %s80, %s94
      %p96 = scmp.eq.s32.totalorder %s37, 0
      %p97 = por %p95, %p96
      %s99 = sadd.s32 %s98, 1
      %p102 = scmp.eq.s32.totalorder %s31, 1
      %p103 = scmp.ne.s32.totalorder %s98, %s100
      %p104 = scmp.eq.s32.totalorder %s31, 0
      %p105 = por %p103, %p104
      %p106 = scmp.ne.s32.totalorder %s98, %s100
      %p107 = scmp.eq.s32.totalorder %s36, 1
      %p108 = por %p106, %p107
      %p109 = scmp.ne.s32.totalorder %s100, %s101
      %p110 = scmp.eq.s32.totalorder %s36, 0
      %p111 = por %p109, %p110
      %p112 = scmp.ne.s32.totalorder %s100, %s101
      %p113 = scmp.eq.s32.totalorder %s37, 1
      %p114 = por %p112, %p113
      %p116 = scmp.ne.s32.totalorder %s101, %s115
      %p117 = scmp.eq.s32.totalorder %s37, 0
      %p118 = por %p116, %p117
      %s120 = sadd.s32 %s119, 1
      %p123 = scmp.eq.s32.totalorder %s31, 1
      %p124 = scmp.ne.s32.totalorder %s119, %s121
      %p125 = scmp.eq.s32.totalorder %s31, 0
      %p126 = por %p124, %p125
      %p127 = scmp.ne.s32.totalorder %s119, %s121
      %p128 = scmp.eq.s32.totalorder %s36, 1
      %p129 = por %p127, %p128
      %p130 = scmp.ne.s32.totalorder %s121, %s122
      %p131 = scmp.eq.s32.totalorder %s36, 0
      %p132 = por %p130, %p131
      %p133 = scmp.ne.s32.totalorder %s121, %s122
      %p134 = scmp.eq.s32.totalorder %s37, 1
      %p135 = por %p133, %p134
      %p137 = scmp.ne.s32.totalorder %s122, %s136
      %p138 = scmp.eq.s32.totalorder %s37, 0
      %p139 = por %p137, %p138
      %s141 = sadd.s32 %s140, 1
      %p144 = scmp.eq.s32.totalorder %s31, 1
      %p145 = scmp.ne.s32.totalorder %s140, %s142
      %p146 = scmp.eq.s32.totalorder %s31, 0
      %p147 = por %p145, %p146
      %p148 = scmp.ne.s32.totalorder %s140, %s142
      %p149 = scmp.eq.s32.totalorder %s36, 1
      %p150 = por %p148, %p149
      %p151 = scmp.ne.s32.totalorder %s142, %s143
      %p152 = scmp.eq.s32.totalorder %s36, 0
      %p153 = por %p151, %p152
      %p154 = scmp.ne.s32.totalorder %s142, %s143
      %p155 = scmp.eq.s32.totalorder %s37, 1
      %p156 = por %p154, %p155
      %p158 = scmp.ne.s32.totalorder %s143, %s157
      %p159 = scmp.eq.s32.totalorder %s37, 0
      %p160 = por %p158, %p159
      %s162 = sadd.s32 %s161, 1
      %p165 = scmp.eq.s32.totalorder %s31, 1
      %p166 = scmp.ne.s32.totalorder %s161, %s163
      %p167 = scmp.eq.s32.totalorder %s31, 0
      %p168 = por %p166, %p167
      %p169 = scmp.ne.s32.totalorder %s161, %s163
      %p170 = scmp.eq.s32.totalorder %s36, 1
      %p171 = por %p169, %p170
      %p172 = scmp.ne.s32.totalorder %s163, %s164
      %p173 = scmp.eq.s32.totalorder %s36, 0
      %p174 = por %p172, %p173
      %p175 = scmp.ne.s32.totalorder %s163, %s164
      %p176 = scmp.eq.s32.totalorder %s37, 1
      %p177 = por %p175, %p176
      %p179 = scmp.ne.s32.totalorder %s164, %s178
      %p180 = scmp.eq.s32.totalorder %s37, 0
      %p181 = por %p179, %p180
      %s183 = sadd.s32 %s182, 1
      %p186 = scmp.eq.s32.totalorder %s31, 1
      %p187 = scmp.ne.s32.totalorder %s182, %s184
      %p188 = scmp.eq.s32.totalorder %s31, 0
      %p189 = por %p187, %p188
      %p190 = scmp.ne.s32.totalorder %s182, %s184
      %p191 = scmp.eq.s32.totalorder %s36, 1
      %p192 = por %p190, %p191
      %p193 = scmp.ne.s32.totalorder %s184, %s185
      %p194 = scmp.eq.s32.totalorder %s36, 0
      %p195 = por %p193, %p194
      %p196 = scmp.ne.s32.totalorder %s184, %s185
      %p197 = scmp.eq.s32.totalorder %s37, 1
      %p198 = por %p196, %p197
      %p200 = scmp.ne.s32.totalorder %s185, %s199
      %p201 = scmp.eq.s32.totalorder %s37, 0
      %p202 = por %p200, %p201
      %s204 = sadd.s32 %s203, 1
      %p207 = scmp.eq.s32.totalorder %s31, 1
      %p208 = scmp.ne.s32.totalorder %s203, %s205
      %p209 = scmp.eq.s32.totalorder %s31, 0
      %p210 = por %p208, %p209
      %p211 = scmp.ne.s32.totalorder %s203, %s205
      %p212 = scmp.eq.s32.totalorder %s36, 1
      %p213 = por %p211, %p212
      %p214 = scmp.ne.s32.totalorder %s205, %s206
      %p215 = scmp.eq.s32.totalorder %s36, 0
      %p216 = por %p214, %p215
      %p217 = scmp.ne.s32.totalorder %s205, %s206
      %p218 = scmp.eq.s32.totalorder %s37, 1
      %p219 = por %p217, %p218
      %p221 = scmp.ne.s32.totalorder %s206, %s220
      %p222 = scmp.eq.s32.totalorder %s37, 0
      %p223 = por %p221, %p222
      %s225 = sadd.s32 %s224, 1
      %p228 = scmp.eq.s32.totalorder %s31, 1
      %p229 = scmp.ne.s32.totalorder %s224, %s226
      %p230 = scmp.eq.s32.totalorder %s31, 0
      %p231 = por %p229, %p230
      %p232 = scmp.ne.s32.totalorder %s224, %s226
      %p233 = scmp.eq.s32.totalorder %s36, 1
      %p234 = por %p232, %p233
      %p235 = scmp.ne.s32.totalorder %s226, %s227
      %p236 = scmp.eq.s32.totalorder %s36, 0
      %p237 = por %p235, %p236
      %p238 = scmp.ne.s32.totalorder %s226, %s227
      %p239 = scmp.eq.s32.totalorder %s37, 1
      %p240 = por %p238, %p239
      %p242 = scmp.ne.s32.totalorder %s227, %s241
      %p243 = scmp.eq.s32.totalorder %s37, 0
      %p244 = por %p242, %p243
      %s246 = sadd.s32 %s245, 1
      %p249 = scmp.eq.s32.totalorder %s31, 1
      %p250 = scmp.ne.s32.totalorder %s245, %s247
      %p251 = scmp.eq.s32.totalorder %s31, 0
      %p252 = por %p250, %p251
      %p253 = scmp.ne.s32.totalorder %s245, %s247
      %p254 = scmp.eq.s32.totalorder %s36, 1
      %p255 = por %p253, %p254
      %p256 = scmp.ne.s32.totalorder %s247, %s248
      %p257 = scmp.eq.s32.totalorder %s36, 0
      %p258 = por %p256, %p257
      %p259 = scmp.ne.s32.totalorder %s247, %s248
      %p260 = scmp.eq.s32.totalorder %s37, 1
      %p261 = por %p259, %p260
      %p263 = scmp.ne.s32.totalorder %s248, %s262
      %p264 = scmp.eq.s32.totalorder %s37, 0
      %p265 = por %p263, %p264
      %s267 = sadd.s32 %s266, 1
      %p270 = scmp.eq.s32.totalorder %s31, 1
      %p271 = scmp.ne.s32.totalorder %s266, %s268
      %p272 = scmp.eq.s32.totalorder %s31, 0
      %p273 = por %p271, %p272
      %p274 = scmp.ne.s32.totalorder %s266, %s268
      %p275 = scmp.eq.s32.totalorder %s36, 1
      %p276 = por %p274, %p275
      %p277 = scmp.ne.s32.totalorder %s268, %s269
      %p278 = scmp.eq.s32.totalorder %s36, 0
      %p279 = por %p277, %p278
      %p280 = scmp.ne.s32.totalorder %s268, %s269
      %p281 = scmp.eq.s32.totalorder %s37, 1
      %p282 = por %p280, %p281
      %p284 = scmp.ne.s32.totalorder %s269, %s283
      %p285 = scmp.eq.s32.totalorder %s37, 0
      %p286 = por %p284, %p285
      %s288 = sadd.s32 %s287, 1
      %p291 = scmp.eq.s32.totalorder %s31, 1
      %p292 = scmp.ne.s32.totalorder %s287, %s289
      %p293 = scmp.eq.s32.totalorder %s31, 0
      %p294 = por %p292, %p293
      %p295 = scmp.ne.s32.totalorder %s287, %s289
      %p296 = scmp.eq.s32.totalorder %s36, 1
      %p297 = por %p295, %p296
      %p298 = scmp.ne.s32.totalorder %s289, %s290
      %p299 = scmp.eq.s32.totalorder %s36, 0
      %p300 = por %p298, %p299
      %p301 = scmp.ne.s32.totalorder %s289, %s290
      %p302 = scmp.eq.s32.totalorder %s37, 1
      %p303 = por %p301, %p302
      %p305 = scmp.ne.s32.totalorder %s290, %s304
      %p306 = scmp.eq.s32.totalorder %s37, 0
      %p307 = por %p305, %p306
      %s309 = sadd.s32 %s308, 1
      %p312 = scmp.eq.s32.totalorder %s31, 1
      %p313 = scmp.ne.s32.totalorder %s308, %s310
      %p314 = scmp.eq.s32.totalorder %s31, 0
      %p315 = por %p313, %p314
      %p316 = scmp.ne.s32.totalorder %s308, %s310
      %p317 = scmp.eq.s32.totalorder %s36, 1
      %p318 = por %p316, %p317
      %p319 = scmp.ne.s32.totalorder %s310, %s311
      %p320 = scmp.eq.s32.totalorder %s36, 0
      %p321 = por %p319, %p320
      %p322 = scmp.ne.s32.totalorder %s310, %s311
      %p323 = scmp.eq.s32.totalorder %s37, 1
      %p324 = por %p322, %p323
      %p326 = scmp.ne.s32.totalorder %s311, %s325
      %p327 = scmp.eq.s32.totalorder %s37, 0
      %p328 = por %p326, %p327
      %s329 = ssub.s32 %s38, %s50
      %s330 = ssub.s32 %s39, %s46
      %s331 = sor.u32 %s329, %s330
      %p332 = scmp.eq.s32.totalorder %s331, 0
      %s334 = sadd.s32 %s333, 1
      %s335 = scalar_select %p332, %s333, %s334
      %p338 = pneg %p332
      %p339 = scmp.eq.s32.totalorder %s31, 1
      %p340 = por %p338, %p339
      %p341 = scmp.ne.s32.totalorder %s333, %s336
      %p342 = scmp.eq.s32.totalorder %s31, 0
      %p343 = por %p341, %p342
      %p344 = scmp.ne.s32.totalorder %s333, %s336
      %p345 = scmp.eq.s32.totalorder %s36, 1
      %p346 = por %p344, %p345
      %p347 = scmp.ne.s32.totalorder %s336, %s337
      %p348 = scmp.eq.s32.totalorder %s36, 0
      %p349 = por %p347, %p348
      %p350 = scmp.ne.s32.totalorder %s336, %s337
      %p351 = scmp.eq.s32.totalorder %s37, 1
      %p352 = por %p350, %p351
      %p354 = scmp.ne.s32.totalorder %s337, %s353
      %p355 = scmp.eq.s32.totalorder %s37, 0
      %p356 = por %p354, %p355
      %s357 = ssub.s32 %s38, %s50
      %s358 = ssub.s32 %s39, %s46
      %s359 = sor.u32 %s357, %s358
      %p360 = scmp.eq.s32.totalorder %s359, 0
      %s362 = sadd.s32 %s361, 1
      %s363 = scalar_select %p360, %s361, %s362
      %p366 = pneg %p360
      %p367 = scmp.eq.s32.totalorder %s31, 1
      %p368 = por %p366, %p367
      %p369 = scmp.ne.s32.totalorder %s361, %s364
      %p370 = scmp.eq.s32.totalorder %s31, 0
      %p371 = por %p369, %p370
      %p372 = scmp.ne.s32.totalorder %s361, %s364
      %p373 = scmp.eq.s32.totalorder %s36, 1
      %p374 = por %p372, %p373
      %p375 = scmp.ne.s32.totalorder %s364, %s365
      %p376 = scmp.eq.s32.totalorder %s36, 0
      %p377 = por %p375, %p376
      %p378 = scmp.ne.s32.totalorder %s364, %s365
      %p379 = scmp.eq.s32.totalorder %s37, 1
      %p380 = por %p378, %p379
      %p382 = scmp.ne.s32.totalorder %s365, %s381
      %p383 = scmp.eq.s32.totalorder %s37, 0
      %p384 = por %p382, %p383
      %p385 = scmp.le.s32.totalorder 1, %s31
      %p386 = scmp.lt.s32.totalorder %s31, 3
      %p387 = pnand %p385, %p386
      %p388 = pneg %p387
      // Predicated region
      $region9: #{tpu_custom_call.1} parent=5 // pred_check
        _
      $region10: #{tpu_custom_call.1} parent=5 // pred_check_branch
        %390 = sbr.rel (%p387) target = $region12
      $region11: #{tpu_custom_call.1} parent=5 // pred_region
        %s391 = ssub.s32 %s31, 1
        // Predicated region
        $region13: #{tpu_custom_call.1} parent=11 // pred_check
          %p392 = pneg %p90
        $region14: #{tpu_custom_call.1} parent=11 // pred_check_branch
          %394 = sbr.rel (%p392) target = $region16
        $region15: #{tpu_custom_call.1} parent=11 // pred_region
          _
        $region16: #{tpu_custom_call.1} parent=11 // pred_fallthru
          _
        // Predicated region
        $region17: #{tpu_custom_call.1} parent=11 // pred_check
          %p395 = pneg %p111
        $region18: #{tpu_custom_call.1} parent=11 // pred_check_branch
          %397 = sbr.rel (%p395) target = $region20
        $region19: #{tpu_custom_call.1} parent=11 // pred_region
          _
        $region20: #{tpu_custom_call.1} parent=11 // pred_fallthru
          _
        // Predicated region
        $region21: #{tpu_custom_call.1} parent=11 // pred_check
          %p398 = pneg %p132
        $region22: #{tpu_custom_call.1} parent=11 // pred_check_branch
          %400 = sbr.rel (%p398) target = $region24
        $region23: #{tpu_custom_call.1} parent=11 // pred_region
          _
        $region24: #{tpu_custom_call.1} parent=11 // pred_fallthru
          _
        // Predicated region
        $region25: #{tpu_custom_call.1} parent=11 // pred_check
          %p401 = pneg %p153
        $region26: #{tpu_custom_call.1} parent=11 // pred_check_branch
          %403 = sbr.rel (%p401) target = $region28
        $region27: #{tpu_custom_call.1} parent=11 // pred_region
          %s405 = ssub.s32 512, 512
          %406 = vsyncadd [#allocation10], %s405
          %s407 = sshll.u32 [#allocation9], 4
          %s408 = int_to_ptr.vmem [resolvable:$true] %s407
          %413 = dma.hbm_to_vmem [thread:$0]  %s4, 512, %s408, [#allocation10], 128, 128, 8
        $region28: #{tpu_custom_call.1} parent=11 // pred_fallthru
          _
        // Predicated region
        $region29: #{tpu_custom_call.1} parent=11 // pred_check
          %p414 = pneg %p174
        $region30: #{tpu_custom_call.1} parent=11 // pred_check_branch
          %416 = sbr.rel (%p414) target = $region32
        $region31: #{tpu_custom_call.1} parent=11 // pred_region
          _
        $region32: #{tpu_custom_call.1} parent=11 // pred_fallthru
          _
        // Predicated region
        $region33: #{tpu_custom_call.1} parent=11 // pred_check
          %p417 = pneg %p195
        $region34: #{tpu_custom_call.1} parent=11 // pred_check_branch
          %419 = sbr.rel (%p417) target = $region36
        $region35: #{tpu_custom_call.1} parent=11 // pred_region
          _
        $region36: #{tpu_custom_call.1} parent=11 // pred_fallthru
          _
        // Predicated region
        $region37: #{tpu_custom_call.1} parent=11 // pred_check
          %p420 = pneg %p216
        $region38: #{tpu_custom_call.1} parent=11 // pred_check_branch
          %422 = sbr.rel (%p420) target = $region40
        $region39: #{tpu_custom_call.1} parent=11 // pred_region
          %s424 = ssub.s32 512, 512
          %425 = vsyncadd [#allocation10], %s424
          %s426 = sshll.u32 [#allocation11], 4
          %s427 = int_to_ptr.vmem [resolvable:$true] %s426
          %432 = dma.hbm_to_vmem [thread:$0]  %s7, 512, %s427, [#allocation10], 128, 128, 8
        $region40: #{tpu_custom_call.1} parent=11 // pred_fallthru
          _
        // Predicated region
        $region41: #{tpu_custom_call.1} parent=11 // pred_check
          %p433 = pneg %p237
        $region42: #{tpu_custom_call.1} parent=11 // pred_check_branch
          %435 = sbr.rel (%p433) target = $region44
        $region43: #{tpu_custom_call.1} parent=11 // pred_region
          _
        $region44: #{tpu_custom_call.1} parent=11 // pred_fallthru
          _
        // Predicated region
        $region45: #{tpu_custom_call.1} parent=11 // pred_check
          %p436 = pneg %p258
        $region46: #{tpu_custom_call.1} parent=11 // pred_check_branch
          %438 = sbr.rel (%p436) target = $region48
        $region47: #{tpu_custom_call.1} parent=11 // pred_region
          _
        $region48: #{tpu_custom_call.1} parent=11 // pred_fallthru
          _
        // Predicated region
        $region49: #{tpu_custom_call.1} parent=11 // pred_check
          %p439 = pneg %p279
        $region50: #{tpu_custom_call.1} parent=11 // pred_check_branch
          %441 = sbr.rel (%p439) target = $region52
        $region51: #{tpu_custom_call.1} parent=11 // pred_region
          _
        $region52: #{tpu_custom_call.1} parent=11 // pred_fallthru
          _
        // Predicated region
        $region53: #{tpu_custom_call.1} parent=11 // pred_check
          %p442 = pneg %p300
        $region54: #{tpu_custom_call.1} parent=11 // pred_check_branch
          %444 = sbr.rel (%p442) target = $region56
        $region55: #{tpu_custom_call.1} parent=11 // pred_region
          _
        $region56: #{tpu_custom_call.1} parent=11 // pred_fallthru
          _
        // Predicated region
        $region57: #{tpu_custom_call.1} parent=11 // pred_check
          %p445 = pneg %p321
        $region58: #{tpu_custom_call.1} parent=11 // pred_check_branch
          %447 = sbr.rel (%p445) target = $region60
        $region59: #{tpu_custom_call.1} parent=11 // pred_region
          _
        $region60: #{tpu_custom_call.1} parent=11 // pred_fallthru
          _
      $region12: #{tpu_custom_call.1} parent=5 // pred_fallthru
        _
      %p448 = scmp.lt.s32.totalorder %s31, 2
      // Predicated region
      $region61: #{tpu_custom_call.1} parent=5 // pred_check
        %p449 = pneg %p448
      $region62: #{tpu_custom_call.1} parent=5 // pred_check_branch
        %451 = sbr.rel (%p449) target = $region64
      $region63: #{tpu_custom_call.1} parent=5 // pred_region
        // Predicated region
        $region65: #{tpu_custom_call.1} parent=63 // pred_check
          %p452 = pneg %p63
        $region66: #{tpu_custom_call.1} parent=63 // pred_check_branch
          %454 = sbr.rel (%p452) target = $region68
        $region67: #{tpu_custom_call.1} parent=63 // pred_region
          %s455 = sand.u32 %s53, 1
          %s456 = scalar_lea.sflag [#allocation7], %s455
          %s457 = sand.u32 %s53, 1
          %s458 = smul.addr %s457, 8
          %s459 = scalar_lea.vmem [#allocation6], %s458
          %s461 = ssub.s32 128, 128
          %462 = vsyncadd %s456, %s461
          %s463 = smul.addr %s38, 128
          %s464 = scalar_lea.hbm %s0, %s463
          %s466 = sshll.u32 %s459, 4
          %s467 = int_to_ptr.vmem [resolvable:$true] %s466
          %469 = dma.hbm_to_vmem [thread:$0]  %s464, 128, %s467, %s456
        $region68: #{tpu_custom_call.1} parent=63 // pred_fallthru
          _
      $region64: #{tpu_custom_call.1} parent=5 // pred_fallthru
        _
      %p470 = scmp.le.s32.totalorder 1, %s31
      %p471 = scmp.lt.s32.totalorder %s31, 3
      %p472 = pnand %p470, %p471
      %p473 = pneg %p472
      // Predicated region
      $region69: #{tpu_custom_call.1} parent=5 // pred_check
        _
      $region70: #{tpu_custom_call.1} parent=5 // pred_check_branch
        %475 = sbr.rel (%p472) target = $region72
      $region71: #{tpu_custom_call.1} parent=5 // pred_region
        %s476 = ssub.s32 %s31, 1
        %s477 = sand.u32 %s56, 1
        %s478 = scalar_lea.sflag [#allocation7], %s477
        %s479 = sand.u32 %s56, 1
        %s480 = smul.addr %s479, 8
        %s481 = scalar_lea.vmem [#allocation6], %s480
        // Predicated region
        $region73: #{tpu_custom_call.1} parent=71 // pred_check
          %p482 = pneg %p69
        $region74: #{tpu_custom_call.1} parent=71 // pred_check_branch
          %484 = sbr.rel (%p482) target = $region76
        $region75: #{tpu_custom_call.1} parent=71 // pred_region
          %485 = dma.done %s478, 128
        $region76: #{tpu_custom_call.1} parent=71 // pred_fallthru
          _
        // Predicated region
        $region77: #{tpu_custom_call.1} parent=71 // pred_check
          %p486 = pneg %p153
        $region78: #{tpu_custom_call.1} parent=71 // pred_check_branch
          %488 = sbr.rel (%p486) target = $region80
        $region79: #{tpu_custom_call.1} parent=71 // pred_region
          %489 = dma.done [#allocation10], 512
        $region80: #{tpu_custom_call.1} parent=71 // pred_fallthru
          _
        // Predicated region
        $region81: #{tpu_custom_call.1} parent=71 // pred_check
          %p490 = pneg %p216
        $region82: #{tpu_custom_call.1} parent=71 // pred_check_branch
          %492 = sbr.rel (%p490) target = $region84
        $region83: #{tpu_custom_call.1} parent=71 // pred_region
          %493 = dma.done [#allocation10], 512
        $region84: #{tpu_custom_call.1} parent=71 // pred_fallthru
          _
        %s494 = sand.u32 %s56, 1
        %s495 = scalar_lea.sflag [#allocation7], %s494
        %s496 = sand.u32 %s56, 1
        %s497 = smul.addr %s496, 8
        %s498 = scalar_lea.vmem [#allocation6], %s497
        %p499 = pneg %p69
        %p500 = pneg %p66
        %p501 = pneg %p90
        %p502 = pneg %p87
        %p503 = pneg %p111
        %p504 = pneg %p108
        %p505 = pneg %p132
        %p506 = pneg %p129
        %p507 = pneg %p153
        %p508 = pneg %p150
        %p509 = pneg %p174
        %p510 = pneg %p171
        %p511 = pneg %p195
        %p512 = pneg %p192
        %p513 = pneg %p216
        %p514 = pneg %p213
        %p515 = pneg %p237
        %p516 = pneg %p234
        %p517 = pneg %p258
        %p518 = pneg %p255
        %p519 = pneg %p279
        %p520 = pneg %p276
        %p521 = pneg %p300
        %p522 = pneg %p297
        %p523 = pneg %p321
        %p524 = pneg %p318
        %p525 = pneg %p349
        %p526 = pneg %p346
        %s527 = sand.u32 %s336, 1
        %s528 = scalar_lea.sflag [#allocation8], %s527
        %s529 = sand.u32 %s336, 1
        %s530 = smul.addr %s529, 8
        %s531 = scalar_lea.vmem [#allocation12], %s530
        %p532 = pneg %p377
        %p533 = pneg %p374
        %s534 = sand.u32 %s364, 1
        %s535 = scalar_lea.sflag [#allocation14], %s534
        %s536 = sand.u32 %s364, 1
        %s537 = smul.addr %s536, 32
        %s538 = scalar_lea.vmem [#allocation13], %s537
        %p539 = scmp.eq.s32.totalorder %s41, 0
        // Predicated region
        $region85: #{tpu_custom_call.1} parent=71 // pred_check
          %p540 = pneg %p539
        $region86: #{tpu_custom_call.1} parent=71 // pred_check_branch
          %542 = sbr.rel (%p540) target = $region88
        $region87: #{tpu_custom_call.1} parent=71 // pred_region
          %v543 = vld [vmem:[%s481] sm:$0xff]
          %v544 = vld [vmem:[%s2] sm:$0xff]
          %v545 = vld [vmem:[%s2 + $0x8] sm:$0xff]
          %v546 = vld [vmem:[%s2 + $0x10] sm:$0xff]
          %v547 = vld [vmem:[%s2 + $0x18] sm:$0xff]
          %vm548 = vcmask 261120
          %v550 = vsel %vm548, %v543, 0
          %552 = vmatprep.subr.mxu0 0.0
          %553 = vmatpush1.msra.mxu0 0.0
          %554 = vmatprep.subr.mxu0 0.0
          %555 = vmatpush1.msra.mxu0 0.0
          %556 = vmatprep.subr.mxu0 0.0
          %557 = vmatpush1.msra.mxu0 0.0
          %558 = vmatprep.subr.mxu0 0.0
          %559 = vmatpush1.msra.mxu0 0.0
          %560 = vmatprep.subr.mxu0 0.0
          %561 = vmatpush1.msra.mxu0 0.0
          %562 = vmatprep.subr.mxu0 0.0
          %563 = vmatpush1.msra.mxu0 0.0
          %564 = vmatprep.subr.mxu0 0.0
          %565 = vmatpush1.msra.mxu0 0.0
          %566 = vmatprep.subr.mxu0 0.0
          %567 = vmatpush1.msra.mxu0 0.0
          %568 = vmatprep.subr.mxu0 0.0
          %569 = vmatpush1.msra.mxu0 0.0
          %570 = vmatprep.subr.mxu0 0.0
          %571 = vmatpush1.msra.mxu0 0.0
          %572 = vmatprep.subr.mxu0 0.0
          %573 = vmatpush1.msra.mxu0 0.0
          %574 = vmatprep.subr.mxu0 0.0
          %575 = vmatpush1.msra.mxu0 0.0
          %576 = vmatprep.subr.mxu0 0.0
          %577 = vmatpush1.msra.mxu0 %v547
          %578 = vmatprep.subr.mxu0 0.0
          %579 = vmatpush1.msra.mxu0 %v546
          %580 = vmatprep.subr.mxu0 0.0
          %581 = vmatpush1.msra.mxu0 %v545
          %582 = vmatprep.subr.mxu0 0.0
          %583 = vmatpush1.msra.mxu0 %v544
          %584 = vmatprep.subr.mxu0 0.0
          %585 = vmatpush2.msra.mxu0 0.0
          %586 = vmatprep.subr.mxu0 0.0
          %587 = vmatpush2.msra.mxu0 0.0
          %588 = vmatprep.subr.mxu0 0.0
          %589 = vmatpush2.msra.mxu0 0.0
          %590 = vmatprep.subr.mxu0 0.0
          %591 = vmatpush2.msra.mxu0 0.0
          %592 = vmatprep.subr.mxu0 0.0
          %593 = vmatpush2.msra.mxu0 0.0
          %594 = vmatprep.subr.mxu0 0.0
          %595 = vmatpush2.msra.mxu0 0.0
          %596 = vmatprep.subr.mxu0 0.0
          %597 = vmatpush2.msra.mxu0 0.0
          %598 = vmatprep.subr.mxu0 0.0
          %599 = vmatpush2.msra.mxu0 0.0
          %600 = vmatprep.subr.mxu0 0.0
          %601 = vmatpush2.msra.mxu0 0.0
          %602 = vmatprep.subr.mxu0 0.0
          %603 = vmatpush2.msra.mxu0 0.0
          %604 = vmatprep.subr.mxu0 0.0
          %605 = vmatpush2.msra.mxu0 0.0
          %606 = vmatprep.subr.mxu0 0.0
          %607 = vmatpush2.msra.mxu0 0.0
          %608 = vmatprep.subr.mxu0 0.0
          %609 = vmatpush2.msra.mxu0 0.0
          %610 = vmatprep.subr.mxu0 0.0
          %611 = vmatpush2.msra.mxu0 0.0
          %612 = vmatprep.subr.mxu0 0.0
          %613 = vmatpush2.msra.mxu0 0.0
          %614 = vmatprep.subr.mxu0 0.0
          %615 = vmatpush2.msra.mxu0 0.0
          %616 = vmatprep.mubr.f32.mxu0 0.0
          %617 = vmatmul.mubr.f32.gmra.mxu0 %v550
          %v618 = vpop.f32.mrf.mxu0
          %v619 = vadd.f32 0.0, %v618
          %v620 = vpop.f32.mrf.mxu0
          %621 = vdwg.mxu0
          %622 = vst.msk [vmem:[#allocation2] sm:$0xff] %vm548, %v619
          %v623 = vld [vmem:[%s3] sm:$0xff]
          %v624 = vld [vmem:[%s3 + $0x8] sm:$0xff]
          %v625 = vld [vmem:[%s3 + $0x10] sm:$0xff]
          %v626 = vld [vmem:[%s3 + $0x18] sm:$0xff]
          %627 = vmatprep.subr.mxu0 0.0
          %628 = vmatpush1.msra.mxu0 0.0
          %629 = vmatprep.subr.mxu0 0.0
          %630 = vmatpush1.msra.mxu0 0.0
          %631 = vmatprep.subr.mxu0 0.0
          %632 = vmatpush1.msra.mxu0 0.0
          %633 = vmatprep.subr.mxu0 0.0
          %634 = vmatpush1.msra.mxu0 0.0
          %635 = vmatprep.subr.mxu0 0.0
          %636 = vmatpush1.msra.mxu0 0.0
          %637 = vmatprep.subr.mxu0 0.0
          %638 = vmatpush1.msra.mxu0 0.0
          %639 = vmatprep.subr.mxu0 0.0
          %640 = vmatpush1.msra.mxu0 0.0
          %641 = vmatprep.subr.mxu0 0.0
          %642 = vmatpush1.msra.mxu0 0.0
          %643 = vmatprep.subr.mxu0 0.0
          %644 = vmatpush1.msra.mxu0 0.0
          %645 = vmatprep.subr.mxu0 0.0
          %646 = vmatpush1.msra.mxu0 0.0
          %647 = vmatprep.subr.mxu0 0.0
          %648 = vmatpush1.msra.mxu0 0.0
          %649 = vmatprep.subr.mxu0 0.0
          %650 = vmatpush1.msra.mxu0 0.0
          %651 = vmatprep.subr.mxu0 0.0
          %652 = vmatpush1.msra.mxu0 %v626
          %653 = vmatprep.subr.mxu0 0.0
          %654 = vmatpush1.msra.mxu0 %v625
          %655 = vmatprep.subr.mxu0 0.0
          %656 = vmatpush1.msra.mxu0 %v624
          %657 = vmatprep.subr.mxu0 0.0
          %658 = vmatpush1.msra.mxu0 %v623
          %659 = vmatprep.subr.mxu0 0.0
          %660 = vmatpush2.msra.mxu0 0.0
          %661 = vmatprep.subr.mxu0 0.0
          %662 = vmatpush2.msra.mxu0 0.0
          %663 = vmatprep.subr.mxu0 0.0
          %664 = vmatpush2.msra.mxu0 0.0
          %665 = vmatprep.subr.mxu0 0.0
          %666 = vmatpush2.msra.mxu0 0.0
          %667 = vmatprep.subr.mxu0 0.0
          %668 = vmatpush2.msra.mxu0 0.0
          %669 = vmatprep.subr.mxu0 0.0
          %670 = vmatpush2.msra.mxu0 0.0
          %671 = vmatprep.subr.mxu0 0.0
          %672 = vmatpush2.msra.mxu0 0.0
          %673 = vmatprep.subr.mxu0 0.0
          %674 = vmatpush2.msra.mxu0 0.0
          %675 = vmatprep.subr.mxu0 0.0
          %676 = vmatpush2.msra.mxu0 0.0
          %677 = vmatprep.subr.mxu0 0.0
          %678 = vmatpush2.msra.mxu0 0.0
          %679 = vmatprep.subr.mxu0 0.0
          %680 = vmatpush2.msra.mxu0 0.0
          %681 = vmatprep.subr.mxu0 0.0
          %682 = vmatpush2.msra.mxu0 0.0
          %683 = vmatprep.subr.mxu0 0.0
          %684 = vmatpush2.msra.mxu0 0.0
          %685 = vmatprep.subr.mxu0 0.0
          %686 = vmatpush2.msra.mxu0 0.0
          %687 = vmatprep.subr.mxu0 0.0
          %688 = vmatpush2.msra.mxu0 0.0
          %689 = vmatprep.subr.mxu0 0.0
          %690 = vmatpush2.msra.mxu0 0.0
          %691 = vmatprep.mubr.f32.mxu0 0.0
          %692 = vmatmul.mubr.f32.gmra.mxu0 %v550
          %v693 = vpop.f32.mrf.mxu0
          %v694 = vadd.f32 0.0, %v693
          %v695 = vpop.f32.mrf.mxu0
          %696 = vdwg.mxu0
          %697 = vst.msk [vmem:[#allocation3] sm:$0xff] %vm548, %v694
        $region88: #{tpu_custom_call.1} parent=71 // pred_fallthru
          _
        %s698 = smul.u32 %s41, 8
        %s699 = scalar_lea.vmem %s481, %s698 [#allocation6]
        %v700 = vld [vmem:[%s699] sm:$0xff]
        %v701 = vld [vmem:[%s1] sm:$0xff]
        %v702 = vld [vmem:[%s1 + $0x8] sm:$0xff]
        %v703 = vld [vmem:[%s1 + $0x10] sm:$0xff]
        %v704 = vld [vmem:[%s1 + $0x18] sm:$0xff]
        %vm705 = vcmask 261120
        %v707 = vsel %vm705, %v700, 0
        %709 = vmatprep.subr.mxu0 0.0
        %710 = vmatpush1.msra.mxu0 0.0
        %711 = vmatprep.subr.mxu0 0.0
        %712 = vmatpush1.msra.mxu0 0.0
        %713 = vmatprep.subr.mxu0 0.0
        %714 = vmatpush1.msra.mxu0 0.0
        %715 = vmatprep.subr.mxu0 0.0
        %716 = vmatpush1.msra.mxu0 0.0
        %717 = vmatprep.subr.mxu0 0.0
        %718 = vmatpush1.msra.mxu0 0.0
        %719 = vmatprep.subr.mxu0 0.0
        %720 = vmatpush1.msra.mxu0 0.0
        %721 = vmatprep.subr.mxu0 0.0
        %722 = vmatpush1.msra.mxu0 0.0
        %723 = vmatprep.subr.mxu0 0.0
        %724 = vmatpush1.msra.mxu0 0.0
        %725 = vmatprep.subr.mxu0 0.0
        %726 = vmatpush1.msra.mxu0 0.0
        %727 = vmatprep.subr.mxu0 0.0
        %728 = vmatpush1.msra.mxu0 0.0
        %729 = vmatprep.subr.mxu0 0.0
        %730 = vmatpush1.msra.mxu0 0.0
        %731 = vmatprep.subr.mxu0 0.0
        %732 = vmatpush1.msra.mxu0 0.0
        %733 = vmatprep.subr.mxu0 0.0
        %734 = vmatpush1.msra.mxu0 %v704
        %735 = vmatprep.subr.mxu0 0.0
        %736 = vmatpush1.msra.mxu0 %v703
        %737 = vmatprep.subr.mxu0 0.0
        %738 = vmatpush1.msra.mxu0 %v702
        %739 = vmatprep.subr.mxu0 0.0
        %740 = vmatpush1.msra.mxu0 %v701
        %741 = vmatprep.subr.mxu0 0.0
        %742 = vmatpush2.msra.mxu0 0.0
        %743 = vmatprep.subr.mxu0 0.0
        %744 = vmatpush2.msra.mxu0 0.0
        %745 = vmatprep.subr.mxu0 0.0
        %746 = vmatpush2.msra.mxu0 0.0
        %747 = vmatprep.subr.mxu0 0.0
        %748 = vmatpush2.msra.mxu0 0.0
        %749 = vmatprep.subr.mxu0 0.0
        %750 = vmatpush2.msra.mxu0 0.0
        %751 = vmatprep.subr.mxu0 0.0
        %752 = vmatpush2.msra.mxu0 0.0
        %753 = vmatprep.subr.mxu0 0.0
        %754 = vmatpush2.msra.mxu0 0.0
        %755 = vmatprep.subr.mxu0 0.0
        %756 = vmatpush2.msra.mxu0 0.0
        %757 = vmatprep.subr.mxu0 0.0
        %758 = vmatpush2.msra.mxu0 0.0
        %759 = vmatprep.subr.mxu0 0.0
        %760 = vmatpush2.msra.mxu0 0.0
        %761 = vmatprep.subr.mxu0 0.0
        %762 = vmatpush2.msra.mxu0 0.0
        %763 = vmatprep.subr.mxu0 0.0
        %764 = vmatpush2.msra.mxu0 0.0
        %765 = vmatprep.subr.mxu0 0.0
        %766 = vmatpush2.msra.mxu0 0.0
        %767 = vmatprep.subr.mxu0 0.0
        %768 = vmatpush2.msra.mxu0 0.0
        %769 = vmatprep.subr.mxu0 0.0
        %770 = vmatpush2.msra.mxu0 0.0
        %771 = vmatprep.subr.mxu0 0.0
        %772 = vmatpush2.msra.mxu0 0.0
        %773 = vmatprep.mubr.f32.mxu0 0.0
        %774 = vmatmul.mubr.f32.gmra.mxu0 %v707
        %v775 = vpop.f32.mrf.mxu0
        %v776 = vadd.f32 0.0, %v775
        %v777 = vpop.f32.mrf.mxu0
        %778 = vdwg.mxu0
        %779 = vst.msk [vmem:[#allocation4] sm:$0xff] %vm705, %v776
        %v780 = vld [vmem:[#allocation4] sm:$0xff]
        %v781 = vld [vmem:[#allocation2] sm:$0xff]
        %v782 = vld [vmem:[#allocation3] sm:$0xff]
        %vm783 = vcmask 64512
        %v785 = vsel %vm783, %v780, 0
        %v788 = vsel %vm783, %v781, 0
        %790 = vmatprep.subr.mxu0 0.0
        %791 = vmatpush1.xpose.msra.mxu0 0.0
        %792 = vmatprep.subr.mxu0 0.0
        %793 = vmatpush1.xpose.msra.mxu0 0.0
        %794 = vmatprep.subr.mxu0 0.0
        %795 = vmatpush1.xpose.msra.mxu0 0.0
        %796 = vmatprep.subr.mxu0 0.0
        %797 = vmatpush1.xpose.msra.mxu0 0.0
        %798 = vmatprep.subr.mxu0 0.0
        %799 = vmatpush1.xpose.msra.mxu0 0.0
        %800 = vmatprep.subr.mxu0 0.0
        %801 = vmatpush1.xpose.msra.mxu0 0.0
        %802 = vmatprep.subr.mxu0 0.0
        %803 = vmatpush1.xpose.msra.mxu0 0.0
        %804 = vmatprep.subr.mxu0 0.0
        %805 = vmatpush1.xpose.msra.mxu0 0.0
        %806 = vmatprep.subr.mxu0 0.0
        %807 = vmatpush1.xpose.msra.mxu0 0.0
        %808 = vmatprep.subr.mxu0 0.0
        %809 = vmatpush1.xpose.msra.mxu0 0.0
        %810 = vmatprep.subr.mxu0 0.0
        %811 = vmatpush1.xpose.msra.mxu0 0.0
        %812 = vmatprep.subr.mxu0 0.0
        %813 = vmatpush1.xpose.msra.mxu0 0.0
        %814 = vmatprep.subr.mxu0 0.0
        %815 = vmatpush1.xpose.msra.mxu0 0.0
        %816 = vmatprep.subr.mxu0 0.0
        %817 = vmatpush1.xpose.msra.mxu0 0.0
        %818 = vmatprep.subr.mxu0 0.0
        %819 = vmatpush1.xpose.msra.mxu0 0.0
        %820 = vmatprep.subr.mxu0 0.0
        %821 = vmatpush1.xpose.msra.mxu0 %v788
        %822 = vmatprep.subr.mxu0 0.0
        %823 = vmatpush2.xpose.msra.mxu0 0.0
        %824 = vmatprep.subr.mxu0 0.0
        %825 = vmatpush2.xpose.msra.mxu0 0.0
        %826 = vmatprep.subr.mxu0 0.0
        %827 = vmatpush2.xpose.msra.mxu0 0.0
        %828 = vmatprep.subr.mxu0 0.0
        %829 = vmatpush2.xpose.msra.mxu0 0.0
        %830 = vmatprep.subr.mxu0 0.0
        %831 = vmatpush2.xpose.msra.mxu0 0.0
        %832 = vmatprep.subr.mxu0 0.0
        %833 = vmatpush2.xpose.msra.mxu0 0.0
        %834 = vmatprep.subr.mxu0 0.0
        %835 = vmatpush2.xpose.msra.mxu0 0.0
        %836 = vmatprep.subr.mxu0 0.0
        %837 = vmatpush2.xpose.msra.mxu0 0.0
        %838 = vmatprep.subr.mxu0 0.0
        %839 = vmatpush2.xpose.msra.mxu0 0.0
        %840 = vmatprep.subr.mxu0 0.0
        %841 = vmatpush2.xpose.msra.mxu0 0.0
        %842 = vmatprep.subr.mxu0 0.0
        %843 = vmatpush2.xpose.msra.mxu0 0.0
        %844 = vmatprep.subr.mxu0 0.0
        %845 = vmatpush2.xpose.msra.mxu0 0.0
        %846 = vmatprep.subr.mxu0 0.0
        %847 = vmatpush2.xpose.msra.mxu0 0.0
        %848 = vmatprep.subr.mxu0 0.0
        %849 = vmatpush2.xpose.msra.mxu0 0.0
        %850 = vmatprep.subr.mxu0 0.0
        %851 = vmatpush2.xpose.msra.mxu0 0.0
        %852 = vmatprep.subr.mxu0 0.0
        %853 = vmatpush2.xpose.msra.mxu0 0.0
        %854 = vmatprep.mubr.f32.mxu0 0.0
        %855 = vmatmul.mubr.f32.gmra.mxu0 %v785
        %v856 = vpop.f32.mrf.mxu0
        %v857 = vadd.f32 0.0, %v856
        %v858 = vpop.f32.mrf.mxu0
        %859 = vdwg.mxu0
        %v860 = vsel %vm783, %v857, -inf
        %861 = vmax.xlane.f32.xlu0 %v860
        %v862 = vpop.xlane.xlu0 %861
        %v863 = vsub.f32 %v857, %v862
        %v864 = vmul.f32 %v863, 1.442695
        %v865 = vpow.pop %v864
        %v866 = vsel %vm783, %v865, 0.0
        %867 = vadd.xlane.f32.xlu0 %v866
        %v868 = vpop.xlane.xlu0 %867
        %v869 = vrcp.pop %v868
        %v870 = vmul.f32 1.0, %v869
        %v871 = vmul.f32 %v865, %v870
        %872 = vst.msk [vmem:[%s538] sm:$0xff] %vm783, %v871
        %v874 = vsel %vm783, %v871, 0
        %876 = vmatprep.subr.mxu0 0.0
        %877 = vmatpush1.msra.mxu0 0.0
        %878 = vmatprep.subr.mxu0 0.0
        %879 = vmatpush1.msra.mxu0 0.0
        %880 = vmatprep.subr.mxu0 0.0
        %881 = vmatpush1.msra.mxu0 0.0
        %882 = vmatprep.subr.mxu0 0.0
        %883 = vmatpush1.msra.mxu0 0.0
        %884 = vmatprep.subr.mxu0 0.0
        %885 = vmatpush1.msra.mxu0 0.0
        %886 = vmatprep.subr.mxu0 0.0
        %887 = vmatpush1.msra.mxu0 0.0
        %888 = vmatprep.subr.mxu0 0.0
        %889 = vmatpush1.msra.mxu0 0.0
        %890 = vmatprep.subr.mxu0 0.0
        %891 = vmatpush1.msra.mxu0 0.0
        %892 = vmatprep.subr.mxu0 0.0
        %893 = vmatpush1.msra.mxu0 0.0
        %894 = vmatprep.subr.mxu0 0.0
        %895 = vmatpush1.msra.mxu0 0.0
        %896 = vmatprep.subr.mxu0 0.0
        %897 = vmatpush1.msra.mxu0 0.0
        %898 = vmatprep.subr.mxu0 0.0
        %899 = vmatpush1.msra.mxu0 0.0
        %900 = vmatprep.subr.mxu0 0.0
        %901 = vmatpush1.msra.mxu0 0.0
        %902 = vmatprep.subr.mxu0 0.0
        %903 = vmatpush1.msra.mxu0 0.0
        %904 = vmatprep.subr.mxu0 0.0
        %905 = vmatpush1.msra.mxu0 0.0
        %906 = vmatprep.subr.mxu0 0.0
        %907 = vmatpush1.msra.mxu0 %v782
        %908 = vmatprep.subr.mxu0 0.0
        %909 = vmatpush2.msra.mxu0 0.0
        %910 = vmatprep.subr.mxu0 0.0
        %911 = vmatpush2.msra.mxu0 0.0
        %912 = vmatprep.subr.mxu0 0.0
        %913 = vmatpush2.msra.mxu0 0.0
        %914 = vmatprep.subr.mxu0 0.0
        %915 = vmatpush2.msra.mxu0 0.0
        %916 = vmatprep.subr.mxu0 0.0
        %917 = vmatpush2.msra.mxu0 0.0
        %918 = vmatprep.subr.mxu0 0.0
        %919 = vmatpush2.msra.mxu0 0.0
        %920 = vmatprep.subr.mxu0 0.0
        %921 = vmatpush2.msra.mxu0 0.0
        %922 = vmatprep.subr.mxu0 0.0
        %923 = vmatpush2.msra.mxu0 0.0
        %924 = vmatprep.subr.mxu0 0.0
        %925 = vmatpush2.msra.mxu0 0.0
        %926 = vmatprep.subr.mxu0 0.0
        %927 = vmatpush2.msra.mxu0 0.0
        %928 = vmatprep.subr.mxu0 0.0
        %929 = vmatpush2.msra.mxu0 0.0
        %930 = vmatprep.subr.mxu0 0.0
        %931 = vmatpush2.msra.mxu0 0.0
        %932 = vmatprep.subr.mxu0 0.0
        %933 = vmatpush2.msra.mxu0 0.0
        %934 = vmatprep.subr.mxu0 0.0
        %935 = vmatpush2.msra.mxu0 0.0
        %936 = vmatprep.subr.mxu0 0.0
        %937 = vmatpush2.msra.mxu0 0.0
        %938 = vmatprep.subr.mxu0 0.0
        %939 = vmatpush2.msra.mxu0 0.0
        %940 = vmatprep.mubr.f32.mxu0 0.0
        %941 = vmatmul.mubr.f32.gmra.mxu0 %v874
        %v942 = vpop.f32.mrf.mxu0
        %v943 = vadd.f32 0.0, %v942
        %v944 = vpop.f32.mrf.mxu0
        %945 = vdwg.mxu0
        %946 = vst.msk [vmem:[#allocation5] sm:$0xff] %vm783, %v943
        %v947 = vld [vmem:[#allocation4] sm:$0xff]
        %v948 = vld [vmem:[#allocation2] sm:$0xff]
        %v949 = vld [vmem:[#allocation3] sm:$0xff]
        %951 = vrot.lane.b32.xlu0 %v947, 120
        %v952 = vpop.permute.xlu0 %951
        %954 = vrot.lane.b32.xlu0 %v948, 120
        %v955 = vpop.permute.xlu0 %954
        %v956 = vsel %vm783, %v952, 0
        %v958 = vsel %vm783, %v955, 0
        %960 = vmatprep.subr.mxu0 0.0
        %961 = vmatpush1.xpose.msra.mxu0 0.0
        %962 = vmatprep.subr.mxu0 0.0
        %963 = vmatpush1.xpose.msra.mxu0 0.0
        %964 = vmatprep.subr.mxu0 0.0
        %965 = vmatpush1.xpose.msra.mxu0 0.0
        %966 = vmatprep.subr.mxu0 0.0
        %967 = vmatpush1.xpose.msra.mxu0 0.0
        %968 = vmatprep.subr.mxu0 0.0
        %969 = vmatpush1.xpose.msra.mxu0 0.0
        %970 = vmatprep.subr.mxu0 0.0
        %971 = vmatpush1.xpose.msra.mxu0 0.0
        %972 = vmatprep.subr.mxu0 0.0
        %973 = vmatpush1.xpose.msra.mxu0 0.0
        %974 = vmatprep.subr.mxu0 0.0
        %975 = vmatpush1.xpose.msra.mxu0 0.0
        %976 = vmatprep.subr.mxu0 0.0
        %977 = vmatpush1.xpose.msra.mxu0 0.0
        %978 = vmatprep.subr.mxu0 0.0
        %979 = vmatpush1.xpose.msra.mxu0 0.0
        %980 = vmatprep.subr.mxu0 0.0
        %981 = vmatpush1.xpose.msra.mxu0 0.0
        %982 = vmatprep.subr.mxu0 0.0
        %983 = vmatpush1.xpose.msra.mxu0 0.0
        %984 = vmatprep.subr.mxu0 0.0
        %985 = vmatpush1.xpose.msra.mxu0 0.0
        %986 = vmatprep.subr.mxu0 0.0
        %987 = vmatpush1.xpose.msra.mxu0 0.0
        %988 = vmatprep.subr.mxu0 0.0
        %989 = vmatpush1.xpose.msra.mxu0 0.0
        %990 = vmatprep.subr.mxu0 0.0
        %991 = vmatpush1.xpose.msra.mxu0 %v958
        %992 = vmatprep.subr.mxu0 0.0
        %993 = vmatpush2.xpose.msra.mxu0 0.0
        %994 = vmatprep.subr.mxu0 0.0
        %995 = vmatpush2.xpose.msra.mxu0 0.0
        %996 = vmatprep.subr.mxu0 0.0
        %997 = vmatpush2.xpose.msra.mxu0 0.0
        %998 = vmatprep.subr.mxu0 0.0
        %999 = vmatpush2.xpose.msra.mxu0 0.0
        %1000 = vmatprep.subr.mxu0 0.0
        %1001 = vmatpush2.xpose.msra.mxu0 0.0
        %1002 = vmatprep.subr.mxu0 0.0
        %1003 = vmatpush2.xpose.msra.mxu0 0.0
        %1004 = vmatprep.subr.mxu0 0.0
        %1005 = vmatpush2.xpose.msra.mxu0 0.0
        %1006 = vmatprep.subr.mxu0 0.0
        %1007 = vmatpush2.xpose.msra.mxu0 0.0
        %1008 = vmatprep.subr.mxu0 0.0
        %1009 = vmatpush2.xpose.msra.mxu0 0.0
        %1010 = vmatprep.subr.mxu0 0.0
        %1011 = vmatpush2.xpose.msra.mxu0 0.0
        %1012 = vmatprep.subr.mxu0 0.0
        %1013 = vmatpush2.xpose.msra.mxu0 0.0
        %1014 = vmatprep.subr.mxu0 0.0
        %1015 = vmatpush2.xpose.msra.mxu0 0.0
        %1016 = vmatprep.subr.mxu0 0.0
        %1017 = vmatpush2.xpose.msra.mxu0 0.0
        %1018 = vmatprep.subr.mxu0 0.0
        %1019 = vmatpush2.xpose.msra.mxu0 0.0
        %1020 = vmatprep.subr.mxu0 0.0
        %1021 = vmatpush2.xpose.msra.mxu0 0.0
        %1022 = vmatprep.subr.mxu0 0.0
        %1023 = vmatpush2.xpose.msra.mxu0 0.0
        %1024 = vmatprep.mubr.f32.mxu0 0.0
        %1025 = vmatmul.mubr.f32.gmra.mxu0 %v956
        %v1026 = vpop.f32.mrf.mxu0
        %v1027 = vadd.f32 0.0, %v1026
        %v1028 = vpop.f32.mrf.mxu0
        %1029 = vdwg.mxu0
        %v1030 = vsel %vm783, %v1027, -inf
        %1031 = vmax.xlane.f32.xlu0 %v1030
        %v1032 = vpop.xlane.xlu0 %1031
        %v1033 = vsub.f32 %v1027, %v1032
        %v1034 = vmul.f32 %v1033, 1.442695
        %v1035 = vpow.pop %v1034
        %v1036 = vsel %vm783, %v1035, 0.0
        %1037 = vadd.xlane.f32.xlu0 %v1036
        %v1038 = vpop.xlane.xlu0 %1037
        %v1039 = vrcp.pop %v1038
        %v1040 = vmul.f32 1.0, %v1039
        %v1041 = vmul.f32 %v1035, %v1040
        %s1042 = scalar_lea.vmem %s538, 8 [#allocation13]
        %1043 = vst.msk [vmem:[%s1042] sm:$0xff] %vm783, %v1041
        %1045 = vrot.lane.b32.xlu0 %v949, 120
        %v1046 = vpop.permute.xlu0 %1045
        %v1049 = vsel %vm783, %v1041, 0
        %1051 = vmatprep.subr.mxu0 0.0
        %1052 = vmatpush1.msra.mxu0 0.0
        %1053 = vmatprep.subr.mxu0 0.0
        %1054 = vmatpush1.msra.mxu0 0.0
        %1055 = vmatprep.subr.mxu0 0.0
        %1056 = vmatpush1.msra.mxu0 0.0
        %1057 = vmatprep.subr.mxu0 0.0
        %1058 = vmatpush1.msra.mxu0 0.0
        %1059 = vmatprep.subr.mxu0 0.0
        %1060 = vmatpush1.msra.mxu0 0.0
        %1061 = vmatprep.subr.mxu0 0.0
        %1062 = vmatpush1.msra.mxu0 0.0
        %1063 = vmatprep.subr.mxu0 0.0
        %1064 = vmatpush1.msra.mxu0 0.0
        %1065 = vmatprep.subr.mxu0 0.0
        %1066 = vmatpush1.msra.mxu0 0.0
        %1067 = vmatprep.subr.mxu0 0.0
        %1068 = vmatpush1.msra.mxu0 0.0
        %1069 = vmatprep.subr.mxu0 0.0
        %1070 = vmatpush1.msra.mxu0 0.0
        %1071 = vmatprep.subr.mxu0 0.0
        %1072 = vmatpush1.msra.mxu0 0.0
        %1073 = vmatprep.subr.mxu0 0.0
        %1074 = vmatpush1.msra.mxu0 0.0
        %1075 = vmatprep.subr.mxu0 0.0
        %1076 = vmatpush1.msra.mxu0 0.0
        %1077 = vmatprep.subr.mxu0 0.0
        %1078 = vmatpush1.msra.mxu0 0.0
        %1079 = vmatprep.subr.mxu0 0.0
        %1080 = vmatpush1.msra.mxu0 0.0
        %1081 = vmatprep.subr.mxu0 0.0
        %1082 = vmatpush1.msra.mxu0 %v1046
        %1083 = vmatprep.subr.mxu0 0.0
        %1084 = vmatpush2.msra.mxu0 0.0
        %1085 = vmatprep.subr.mxu0 0.0
        %1086 = vmatpush2.msra.mxu0 0.0
        %1087 = vmatprep.subr.mxu0 0.0
        %1088 = vmatpush2.msra.mxu0 0.0
        %1089 = vmatprep.subr.mxu0 0.0
        %1090 = vmatpush2.msra.mxu0 0.0
        %1091 = vmatprep.subr.mxu0 0.0
        %1092 = vmatpush2.msra.mxu0 0.0
        %1093 = vmatprep.subr.mxu0 0.0
        %1094 = vmatpush2.msra.mxu0 0.0
        %1095 = vmatprep.subr.mxu0 0.0
        %1096 = vmatpush2.msra.mxu0 0.0
        %1097 = vmatprep.subr.mxu0 0.0
        %1098 = vmatpush2.msra.mxu0 0.0
        %1099 = vmatprep.subr.mxu0 0.0
        %1100 = vmatpush2.msra.mxu0 0.0
        %1101 = vmatprep.subr.mxu0 0.0
        %1102 = vmatpush2.msra.mxu0 0.0
        %1103 = vmatprep.subr.mxu0 0.0
        %1104 = vmatpush2.msra.mxu0 0.0
        %1105 = vmatprep.subr.mxu0 0.0
        %1106 = vmatpush2.msra.mxu0 0.0
        %1107 = vmatprep.subr.mxu0 0.0
        %1108 = vmatpush2.msra.mxu0 0.0
        %1109 = vmatprep.subr.mxu0 0.0
        %1110 = vmatpush2.msra.mxu0 0.0
        %1111 = vmatprep.subr.mxu0 0.0
        %1112 = vmatpush2.msra.mxu0 0.0
        %1113 = vmatprep.subr.mxu0 0.0
        %1114 = vmatpush2.msra.mxu0 0.0
        %1115 = vmatprep.mubr.f32.mxu0 0.0
        %1116 = vmatmul.mubr.f32.gmra.mxu0 %v1049
        %v1117 = vpop.f32.mrf.mxu0
        %v1118 = vadd.f32 0.0, %v1117
        %v1119 = vpop.f32.mrf.mxu0
        %1120 = vdwg.mxu0
        %1122 = vrot.lane.b32.xlu0 %v1118, 8
        %v1123 = vpop.permute.xlu0 %1122
        %vm1125 = vcmask 130112
        %1126 = vst.msk [vmem:[#allocation5] sm:$0xff] %vm1125, %v1123
        %v1127 = vld [vmem:[#allocation4] sm:$0xff]
        %v1128 = vld [vmem:[#allocation2] sm:$0xff]
        %v1129 = vld [vmem:[#allocation3] sm:$0xff]
        %1131 = vrot.lane.b32.xlu0 %v1127, 112
        %v1132 = vpop.permute.xlu0 %1131
        %1134 = vrot.lane.b32.xlu0 %v1128, 112
        %v1135 = vpop.permute.xlu0 %1134
        %v1136 = vsel %vm783, %v1132, 0
        %v1138 = vsel %vm783, %v1135, 0
        %1140 = vmatprep.subr.mxu0 0.0
        %1141 = vmatpush1.xpose.msra.mxu0 0.0
        %1142 = vmatprep.subr.mxu0 0.0
        %1143 = vmatpush1.xpose.msra.mxu0 0.0
        %1144 = vmatprep.subr.mxu0 0.0
        %1145 = vmatpush1.xpose.msra.mxu0 0.0
        %1146 = vmatprep.subr.mxu0 0.0
        %1147 = vmatpush1.xpose.msra.mxu0 0.0
        %1148 = vmatprep.subr.mxu0 0.0
        %1149 = vmatpush1.xpose.msra.mxu0 0.0
        %1150 = vmatprep.subr.mxu0 0.0
        %1151 = vmatpush1.xpose.msra.mxu0 0.0
        %1152 = vmatprep.subr.mxu0 0.0
        %1153 = vmatpush1.xpose.msra.mxu0 0.0
        %1154 = vmatprep.subr.mxu0 0.0
        %1155 = vmatpush1.xpose.msra.mxu0 0.0
        %1156 = vmatprep.subr.mxu0 0.0
        %1157 = vmatpush1.xpose.msra.mxu0 0.0
        %1158 = vmatprep.subr.mxu0 0.0
        %1159 = vmatpush1.xpose.msra.mxu0 0.0
        %1160 = vmatprep.subr.mxu0 0.0
        %1161 = vmatpush1.xpose.msra.mxu0 0.0
        %1162 = vmatprep.subr.mxu0 0.0
        %1163 = vmatpush1.xpose.msra.mxu0 0.0
        %1164 = vmatprep.subr.mxu0 0.0
        %1165 = vmatpush1.xpose.msra.mxu0 0.0
        %1166 = vmatprep.subr.mxu0 0.0
        %1167 = vmatpush1.xpose.msra.mxu0 0.0
        %1168 = vmatprep.subr.mxu0 0.0
        %1169 = vmatpush1.xpose.msra.mxu0 0.0
        %1170 = vmatprep.subr.mxu0 0.0
        %1171 = vmatpush1.xpose.msra.mxu0 %v1138
        %1172 = vmatprep.subr.mxu0 0.0
        %1173 = vmatpush2.xpose.msra.mxu0 0.0
        %1174 = vmatprep.subr.mxu0 0.0
        %1175 = vmatpush2.xpose.msra.mxu0 0.0
        %1176 = vmatprep.subr.mxu0 0.0
        %1177 = vmatpush2.xpose.msra.mxu0 0.0
        %1178 = vmatprep.subr.mxu0 0.0
        %1179 = vmatpush2.xpose.msra.mxu0 0.0
        %1180 = vmatprep.subr.mxu0 0.0
        %1181 = vmatpush2.xpose.msra.mxu0 0.0
        %1182 = vmatprep.subr.mxu0 0.0
        %1183 = vmatpush2.xpose.msra.mxu0 0.0
        %1184 = vmatprep.subr.mxu0 0.0
        %1185 = vmatpush2.xpose.msra.mxu0 0.0
        %1186 = vmatprep.subr.mxu0 0.0
        %1187 = vmatpush2.xpose.msra.mxu0 0.0
        %1188 = vmatprep.subr.mxu0 0.0
        %1189 = vmatpush2.xpose.msra.mxu0 0.0
        %1190 = vmatprep.subr.mxu0 0.0
        %1191 = vmatpush2.xpose.msra.mxu0 0.0
        %1192 = vmatprep.subr.mxu0 0.0
        %1193 = vmatpush2.xpose.msra.mxu0 0.0
        %1194 = vmatprep.subr.mxu0 0.0
        %1195 = vmatpush2.xpose.msra.mxu0 0.0
        %1196 = vmatprep.subr.mxu0 0.0
        %1197 = vmatpush2.xpose.msra.mxu0 0.0
        %1198 = vmatprep.subr.mxu0 0.0
        %1199 = vmatpush2.xpose.msra.mxu0 0.0
        %1200 = vmatprep.subr.mxu0 0.0
        %1201 = vmatpush2.xpose.msra.mxu0 0.0
        %1202 = vmatprep.subr.mxu0 0.0
        %1203 = vmatpush2.xpose.msra.mxu0 0.0
        %1204 = vmatprep.mubr.f32.mxu0 0.0
        %1205 = vmatmul.mubr.f32.gmra.mxu0 %v1136
        %v1206 = vpop.f32.mrf.mxu0
        %v1207 = vadd.f32 0.0, %v1206
        %v1208 = vpop.f32.mrf.mxu0
        %1209 = vdwg.mxu0
        %v1210 = vsel %vm783, %v1207, -inf
        %1211 = vmax.xlane.f32.xlu0 %v1210
        %v1212 = vpop.xlane.xlu0 %1211
        %v1213 = vsub.f32 %v1207, %v1212
        %v1214 = vmul.f32 %v1213, 1.442695
        %v1215 = vpow.pop %v1214
        %v1216 = vsel %vm783, %v1215, 0.0
        %1217 = vadd.xlane.f32.xlu0 %v1216
        %v1218 = vpop.xlane.xlu0 %1217
        %v1219 = vrcp.pop %v1218
        %v1220 = vmul.f32 1.0, %v1219
        %v1221 = vmul.f32 %v1215, %v1220
        %s1222 = scalar_lea.vmem %s538, 16 [#allocation13]
        %1223 = vst.msk [vmem:[%s1222] sm:$0xff] %vm783, %v1221
        %1225 = vrot.lane.b32.xlu0 %v1129, 112
        %v1226 = vpop.permute.xlu0 %1225
        %v1229 = vsel %vm783, %v1221, 0
        %1231 = vmatprep.subr.mxu0 0.0
        %1232 = vmatpush1.msra.mxu0 0.0
        %1233 = vmatprep.subr.mxu0 0.0
        %1234 = vmatpush1.msra.mxu0 0.0
        %1235 = vmatprep.subr.mxu0 0.0
        %1236 = vmatpush1.msra.mxu0 0.0
        %1237 = vmatprep.subr.mxu0 0.0
        %1238 = vmatpush1.msra.mxu0 0.0
        %1239 = vmatprep.subr.mxu0 0.0
        %1240 = vmatpush1.msra.mxu0 0.0
        %1241 = vmatprep.subr.mxu0 0.0
        %1242 = vmatpush1.msra.mxu0 0.0
        %1243 = vmatprep.subr.mxu0 0.0
        %1244 = vmatpush1.msra.mxu0 0.0
        %1245 = vmatprep.subr.mxu0 0.0
        %1246 = vmatpush1.msra.mxu0 0.0
        %1247 = vmatprep.subr.mxu0 0.0
        %1248 = vmatpush1.msra.mxu0 0.0
        %1249 = vmatprep.subr.mxu0 0.0
        %1250 = vmatpush1.msra.mxu0 0.0
        %1251 = vmatprep.subr.mxu0 0.0
        %1252 = vmatpush1.msra.mxu0 0.0
        %1253 = vmatprep.subr.mxu0 0.0
        %1254 = vmatpush1.msra.mxu0 0.0
        %1255 = vmatprep.subr.mxu0 0.0
        %1256 = vmatpush1.msra.mxu0 0.0
        %1257 = vmatprep.subr.mxu0 0.0
        %1258 = vmatpush1.msra.mxu0 0.0
        %1259 = vmatprep.subr.mxu0 0.0
        %1260 = vmatpush1.msra.mxu0 0.0
        %1261 = vmatprep.subr.mxu0 0.0
        %1262 = vmatpush1.msra.mxu0 %v1226
        %1263 = vmatprep.subr.mxu0 0.0
        %1264 = vmatpush2.msra.mxu0 0.0
        %1265 = vmatprep.subr.mxu0 0.0
        %1266 = vmatpush2.msra.mxu0 0.0
        %1267 = vmatprep.subr.mxu0 0.0
        %1268 = vmatpush2.msra.mxu0 0.0
        %1269 = vmatprep.subr.mxu0 0.0
        %1270 = vmatpush2.msra.mxu0 0.0
        %1271 = vmatprep.subr.mxu0 0.0
        %1272 = vmatpush2.msra.mxu0 0.0
        %1273 = vmatprep.subr.mxu0 0.0
        %1274 = vmatpush2.msra.mxu0 0.0
        %1275 = vmatprep.subr.mxu0 0.0
        %1276 = vmatpush2.msra.mxu0 0.0
        %1277 = vmatprep.subr.mxu0 0.0
        %1278 = vmatpush2.msra.mxu0 0.0
        %1279 = vmatprep.subr.mxu0 0.0
        %1280 = vmatpush2.msra.mxu0 0.0
        %1281 = vmatprep.subr.mxu0 0.0
        %1282 = vmatpush2.msra.mxu0 0.0
        %1283 = vmatprep.subr.mxu0 0.0
        %1284 = vmatpush2.msra.mxu0 0.0
        %1285 = vmatprep.subr.mxu0 0.0
        %1286 = vmatpush2.msra.mxu0 0.0
        %1287 = vmatprep.subr.mxu0 0.0
        %1288 = vmatpush2.msra.mxu0 0.0
        %1289 = vmatprep.subr.mxu0 0.0
        %1290 = vmatpush2.msra.mxu0 0.0
        %1291 = vmatprep.subr.mxu0 0.0
        %1292 = vmatpush2.msra.mxu0 0.0
        %1293 = vmatprep.subr.mxu0 0.0
        %1294 = vmatpush2.msra.mxu0 0.0
        %1295 = vmatprep.mubr.f32.mxu0 0.0
        %1296 = vmatmul.mubr.f32.gmra.mxu0 %v1229
        %v1297 = vpop.f32.mrf.mxu0
        %v1298 = vadd.f32 0.0, %v1297
        %v1299 = vpop.f32.mrf.mxu0
        %1300 = vdwg.mxu0
        %1302 = vrot.lane.b32.xlu0 %v1298, 16
        %v1303 = vpop.permute.xlu0 %1302
        %vm1305 = vcmask 195712
        %1306 = vst.msk [vmem:[#allocation5] sm:$0xff] %vm1305, %v1303
        %v1307 = vld [vmem:[#allocation4] sm:$0xff]
        %v1308 = vld [vmem:[#allocation2] sm:$0xff]
        %v1309 = vld [vmem:[#allocation3] sm:$0xff]
        %1311 = vrot.lane.b32.xlu0 %v1307, 104
        %v1312 = vpop.permute.xlu0 %1311
        %1314 = vrot.lane.b32.xlu0 %v1308, 104
        %v1315 = vpop.permute.xlu0 %1314
        %v1316 = vsel %vm783, %v1312, 0
        %v1318 = vsel %vm783, %v1315, 0
        %1320 = vmatprep.subr.mxu0 0.0
        %1321 = vmatpush1.xpose.msra.mxu0 0.0
        %1322 = vmatprep.subr.mxu0 0.0
        %1323 = vmatpush1.xpose.msra.mxu0 0.0
        %1324 = vmatprep.subr.mxu0 0.0
        %1325 = vmatpush1.xpose.msra.mxu0 0.0
        %1326 = vmatprep.subr.mxu0 0.0
        %1327 = vmatpush1.xpose.msra.mxu0 0.0
        %1328 = vmatprep.subr.mxu0 0.0
        %1329 = vmatpush1.xpose.msra.mxu0 0.0
        %1330 = vmatprep.subr.mxu0 0.0
        %1331 = vmatpush1.xpose.msra.mxu0 0.0
        %1332 = vmatprep.subr.mxu0 0.0
        %1333 = vmatpush1.xpose.msra.mxu0 0.0
        %1334 = vmatprep.subr.mxu0 0.0
        %1335 = vmatpush1.xpose.msra.mxu0 0.0
        %1336 = vmatprep.subr.mxu0 0.0
        %1337 = vmatpush1.xpose.msra.mxu0 0.0
        %1338 = vmatprep.subr.mxu0 0.0
        %1339 = vmatpush1.xpose.msra.mxu0 0.0
        %1340 = vmatprep.subr.mxu0 0.0
        %1341 = vmatpush1.xpose.msra.mxu0 0.0
        %1342 = vmatprep.subr.mxu0 0.0
        %1343 = vmatpush1.xpose.msra.mxu0 0.0
        %1344 = vmatprep.subr.mxu0 0.0
        %1345 = vmatpush1.xpose.msra.mxu0 0.0
        %1346 = vmatprep.subr.mxu0 0.0
        %1347 = vmatpush1.xpose.msra.mxu0 0.0
        %1348 = vmatprep.subr.mxu0 0.0
        %1349 = vmatpush1.xpose.msra.mxu0 0.0
        %1350 = vmatprep.subr.mxu0 0.0
        %1351 = vmatpush1.xpose.msra.mxu0 %v1318
        %1352 = vmatprep.subr.mxu0 0.0
        %1353 = vmatpush2.xpose.msra.mxu0 0.0
        %1354 = vmatprep.subr.mxu0 0.0
        %1355 = vmatpush2.xpose.msra.mxu0 0.0
        %1356 = vmatprep.subr.mxu0 0.0
        %1357 = vmatpush2.xpose.msra.mxu0 0.0
        %1358 = vmatprep.subr.mxu0 0.0
        %1359 = vmatpush2.xpose.msra.mxu0 0.0
        %1360 = vmatprep.subr.mxu0 0.0
        %1361 = vmatpush2.xpose.msra.mxu0 0.0
        %1362 = vmatprep.subr.mxu0 0.0
        %1363 = vmatpush2.xpose.msra.mxu0 0.0
        %1364 = vmatprep.subr.mxu0 0.0
        %1365 = vmatpush2.xpose.msra.mxu0 0.0
        %1366 = vmatprep.subr.mxu0 0.0
        %1367 = vmatpush2.xpose.msra.mxu0 0.0
        %1368 = vmatprep.subr.mxu0 0.0
        %1369 = vmatpush2.xpose.msra.mxu0 0.0
        %1370 = vmatprep.subr.mxu0 0.0
        %1371 = vmatpush2.xpose.msra.mxu0 0.0
        %1372 = vmatprep.subr.mxu0 0.0
        %1373 = vmatpush2.xpose.msra.mxu0 0.0
        %1374 = vmatprep.subr.mxu0 0.0
        %1375 = vmatpush2.xpose.msra.mxu0 0.0
        %1376 = vmatprep.subr.mxu0 0.0
        %1377 = vmatpush2.xpose.msra.mxu0 0.0
        %1378 = vmatprep.subr.mxu0 0.0
        %1379 = vmatpush2.xpose.msra.mxu0 0.0
        %1380 = vmatprep.subr.mxu0 0.0
        %1381 = vmatpush2.xpose.msra.mxu0 0.0
        %1382 = vmatprep.subr.mxu0 0.0
        %1383 = vmatpush2.xpose.msra.mxu0 0.0
        %1384 = vmatprep.mubr.f32.mxu0 0.0
        %1385 = vmatmul.mubr.f32.gmra.mxu0 %v1316
        %v1386 = vpop.f32.mrf.mxu0
        %v1387 = vadd.f32 0.0, %v1386
        %v1388 = vpop.f32.mrf.mxu0
        %1389 = vdwg.mxu0
        %v1390 = vsel %vm783, %v1387, -inf
        %1391 = vmax.xlane.f32.xlu0 %v1390
        %v1392 = vpop.xlane.xlu0 %1391
        %v1393 = vsub.f32 %v1387, %v1392
        %v1394 = vmul.f32 %v1393, 1.442695
        %v1395 = vpow.pop %v1394
        %v1396 = vsel %vm783, %v1395, 0.0
        %1397 = vadd.xlane.f32.xlu0 %v1396
        %v1398 = vpop.xlane.xlu0 %1397
        %v1399 = vrcp.pop %v1398
        %v1400 = vmul.f32 1.0, %v1399
        %v1401 = vmul.f32 %v1395, %v1400
        %s1402 = scalar_lea.vmem %s538, 24 [#allocation13]
        %1403 = vst.msk [vmem:[%s1402] sm:$0xff] %vm783, %v1401
        %1405 = vrot.lane.b32.xlu0 %v1309, 104
        %v1406 = vpop.permute.xlu0 %1405
        %v1409 = vsel %vm783, %v1401, 0
        %1411 = vmatprep.subr.mxu0 0.0
        %1412 = vmatpush1.msra.mxu0 0.0
        %1413 = vmatprep.subr.mxu0 0.0
        %1414 = vmatpush1.msra.mxu0 0.0
        %1415 = vmatprep.subr.mxu0 0.0
        %1416 = vmatpush1.msra.mxu0 0.0
        %1417 = vmatprep.subr.mxu0 0.0
        %1418 = vmatpush1.msra.mxu0 0.0
        %1419 = vmatprep.subr.mxu0 0.0
        %1420 = vmatpush1.msra.mxu0 0.0
        %1421 = vmatprep.subr.mxu0 0.0
        %1422 = vmatpush1.msra.mxu0 0.0
        %1423 = vmatprep.subr.mxu0 0.0
        %1424 = vmatpush1.msra.mxu0 0.0
        %1425 = vmatprep.subr.mxu0 0.0
        %1426 = vmatpush1.msra.mxu0 0.0
        %1427 = vmatprep.subr.mxu0 0.0
        %1428 = vmatpush1.msra.mxu0 0.0
        %1429 = vmatprep.subr.mxu0 0.0
        %1430 = vmatpush1.msra.mxu0 0.0
        %1431 = vmatprep.subr.mxu0 0.0
        %1432 = vmatpush1.msra.mxu0 0.0
        %1433 = vmatprep.subr.mxu0 0.0
        %1434 = vmatpush1.msra.mxu0 0.0
        %1435 = vmatprep.subr.mxu0 0.0
        %1436 = vmatpush1.msra.mxu0 0.0
        %1437 = vmatprep.subr.mxu0 0.0
        %1438 = vmatpush1.msra.mxu0 0.0
        %1439 = vmatprep.subr.mxu0 0.0
        %1440 = vmatpush1.msra.mxu0 0.0
        %1441 = vmatprep.subr.mxu0 0.0
        %1442 = vmatpush1.msra.mxu0 %v1406
        %1443 = vmatprep.subr.mxu0 0.0
        %1444 = vmatpush2.msra.mxu0 0.0
        %1445 = vmatprep.subr.mxu0 0.0
        %1446 = vmatpush2.msra.mxu0 0.0
        %1447 = vmatprep.subr.mxu0 0.0
        %1448 = vmatpush2.msra.mxu0 0.0
        %1449 = vmatprep.subr.mxu0 0.0
        %1450 = vmatpush2.msra.mxu0 0.0
        %1451 = vmatprep.subr.mxu0 0.0
        %1452 = vmatpush2.msra.mxu0 0.0
        %1453 = vmatprep.subr.mxu0 0.0
        %1454 = vmatpush2.msra.mxu0 0.0
        %1455 = vmatprep.subr.mxu0 0.0
        %1456 = vmatpush2.msra.mxu0 0.0
        %1457 = vmatprep.subr.mxu0 0.0
        %1458 = vmatpush2.msra.mxu0 0.0
        %1459 = vmatprep.subr.mxu0 0.0
        %1460 = vmatpush2.msra.mxu0 0.0
        %1461 = vmatprep.subr.mxu0 0.0
        %1462 = vmatpush2.msra.mxu0 0.0
        %1463 = vmatprep.subr.mxu0 0.0
        %1464 = vmatpush2.msra.mxu0 0.0
        %1465 = vmatprep.subr.mxu0 0.0
        %1466 = vmatpush2.msra.mxu0 0.0
        %1467 = vmatprep.subr.mxu0 0.0
        %1468 = vmatpush2.msra.mxu0 0.0
        %1469 = vmatprep.subr.mxu0 0.0
        %1470 = vmatpush2.msra.mxu0 0.0
        %1471 = vmatprep.subr.mxu0 0.0
        %1472 = vmatpush2.msra.mxu0 0.0
        %1473 = vmatprep.subr.mxu0 0.0
        %1474 = vmatpush2.msra.mxu0 0.0
        %1475 = vmatprep.mubr.f32.mxu0 0.0
        %1476 = vmatmul.mubr.f32.gmra.mxu0 %v1409
        %v1477 = vpop.f32.mrf.mxu0
        %v1478 = vadd.f32 0.0, %v1477
        %v1479 = vpop.f32.mrf.mxu0
        %1480 = vdwg.mxu0
        %1482 = vrot.lane.b32.xlu0 %v1478, 24
        %v1483 = vpop.permute.xlu0 %1482
        %vm1485 = vcmask 261312
        %1486 = vst.msk [vmem:[#allocation5] sm:$0xff] %vm1485, %v1483
        %v1487 = vld [vmem:[#allocation5] sm:$0xff]
        %v1488 = vld [vmem:[#allocation9] sm:$0xff]
        %v1489 = vld [vmem:[#allocation9 + $0x8] sm:$0xff]
        %v1490 = vld [vmem:[#allocation9 + $0x10] sm:$0xff]
        %v1491 = vld [vmem:[#allocation9 + $0x18] sm:$0xff]
        %v1493 = vsel %vm705, %v1487, 0
        %1495 = vmatprep.subr.mxu0 0.0
        %1496 = vmatpush1.msra.mxu0 0.0
        %1497 = vmatprep.subr.mxu0 0.0
        %1498 = vmatpush1.msra.mxu0 0.0
        %1499 = vmatprep.subr.mxu0 0.0
        %1500 = vmatpush1.msra.mxu0 0.0
        %1501 = vmatprep.subr.mxu0 0.0
        %1502 = vmatpush1.msra.mxu0 0.0
        %1503 = vmatprep.subr.mxu0 0.0
        %1504 = vmatpush1.msra.mxu0 0.0
        %1505 = vmatprep.subr.mxu0 0.0
        %1506 = vmatpush1.msra.mxu0 0.0
        %1507 = vmatprep.subr.mxu0 0.0
        %1508 = vmatpush1.msra.mxu0 0.0
        %1509 = vmatprep.subr.mxu0 0.0
        %1510 = vmatpush1.msra.mxu0 0.0
        %1511 = vmatprep.subr.mxu0 0.0
        %1512 = vmatpush1.msra.mxu0 0.0
        %1513 = vmatprep.subr.mxu0 0.0
        %1514 = vmatpush1.msra.mxu0 0.0
        %1515 = vmatprep.subr.mxu0 0.0
        %1516 = vmatpush1.msra.mxu0 0.0
        %1517 = vmatprep.subr.mxu0 0.0
        %1518 = vmatpush1.msra.mxu0 0.0
        %1519 = vmatprep.subr.mxu0 0.0
        %1520 = vmatpush1.msra.mxu0 %v1491
        %1521 = vmatprep.subr.mxu0 0.0
        %1522 = vmatpush1.msra.mxu0 %v1490
        %1523 = vmatprep.subr.mxu0 0.0
        %1524 = vmatpush1.msra.mxu0 %v1489
        %1525 = vmatprep.subr.mxu0 0.0
        %1526 = vmatpush1.msra.mxu0 %v1488
        %1527 = vmatprep.subr.mxu0 0.0
        %1528 = vmatpush2.msra.mxu0 0.0
        %1529 = vmatprep.subr.mxu0 0.0
        %1530 = vmatpush2.msra.mxu0 0.0
        %1531 = vmatprep.subr.mxu0 0.0
        %1532 = vmatpush2.msra.mxu0 0.0
        %1533 = vmatprep.subr.mxu0 0.0
        %1534 = vmatpush2.msra.mxu0 0.0
        %1535 = vmatprep.subr.mxu0 0.0
        %1536 = vmatpush2.msra.mxu0 0.0
        %1537 = vmatprep.subr.mxu0 0.0
        %1538 = vmatpush2.msra.mxu0 0.0
        %1539 = vmatprep.subr.mxu0 0.0
        %1540 = vmatpush2.msra.mxu0 0.0
        %1541 = vmatprep.subr.mxu0 0.0
        %1542 = vmatpush2.msra.mxu0 0.0
        %1543 = vmatprep.subr.mxu0 0.0
        %1544 = vmatpush2.msra.mxu0 0.0
        %1545 = vmatprep.subr.mxu0 0.0
        %1546 = vmatpush2.msra.mxu0 0.0
        %1547 = vmatprep.subr.mxu0 0.0
        %1548 = vmatpush2.msra.mxu0 0.0
        %1549 = vmatprep.subr.mxu0 0.0
        %1550 = vmatpush2.msra.mxu0 0.0
        %1551 = vmatprep.subr.mxu0 0.0
        %1552 = vmatpush2.msra.mxu0 0.0
        %1553 = vmatprep.subr.mxu0 0.0
        %1554 = vmatpush2.msra.mxu0 0.0
        %1555 = vmatprep.subr.mxu0 0.0
        %1556 = vmatpush2.msra.mxu0 0.0
        %1557 = vmatprep.subr.mxu0 0.0
        %1558 = vmatpush2.msra.mxu0 0.0
        %1559 = vmatprep.mubr.f32.mxu0 0.0
        %1560 = vmatmul.mubr.f32.gmra.mxu0 %v1493
        %v1561 = vpop.f32.mrf.mxu0
        %v1562 = vadd.f32 %v700, %v1561
        %v1563 = vpop.f32.mrf.mxu0
        %1564 = vdwg.mxu0
        %v1565 = vld [vmem:[%s5] sm:$0x1]
        %v1566 = vld [vmem:[%s6] sm:$0x1]
        %v1567 = vsel %vm705, %v1562, 0.0
        %1568 = vadd.xlane.f32.xlu0 %v1567
        %v1569 = vpop.xlane.xlu0 %1568
        %v1570 = vrcp.pop 32.0
        %v1571 = vmul.f32 %v1569, %v1570
        %v1572 = vsub.f32 %v1562, %v1571
        %v1573 = vmul.f32 %v1572, %v1572
        %v1574 = vsel %vm705, %v1573, 0.0
        %1575 = vadd.xlane.f32.xlu0 %v1574
        %v1576 = vpop.xlane.xlu0 %1575
        %v1577 = vmul.f32 %v1576, %v1570
        %v1578 = vadd.f32 %v1577, 1e-06
        %v1579 = vrsqrt.pop %v1578
        %v1580 = vmul.f32 %v1572, %v1579
        %v1582 = vlaneseq
        %v1583 = vshrl.u32 %v1582, 7
        %v1584 = vsub.s32 0, %v1583
        %v1585 = vrot.slane %v1565, %v1584
        %v1587 = vmul.f32 %v1580, %v1585
        %v1589 = vlaneseq
        %v1590 = vshrl.u32 %v1589, 7
        %v1591 = vsub.s32 0, %v1590
        %v1592 = vrot.slane %v1566, %v1591
        %v1594 = vadd.f32 %v1587, %v1592
        %v1595 = vld [vmem:[#allocation11] sm:$0xff]
        %v1596 = vld [vmem:[#allocation11 + $0x8] sm:$0xff]
        %v1597 = vld [vmem:[#allocation11 + $0x10] sm:$0xff]
        %v1598 = vld [vmem:[#allocation11 + $0x18] sm:$0xff]
        %v1599 = vld [vmem:[%s8] sm:$0x1]
        %v1601 = vlaneseq
        %v1602 = vshrl.u32 %v1601, 7
        %v1603 = vsub.s32 0, %v1602
        %v1604 = vrot.slane %v1599, %v1603
        %v1607 = vsel %vm705, %v1594, 0
        %1609 = vmatprep.subr.mxu0 0.0
        %1610 = vmatpush1.msra.mxu0 0.0
        %1611 = vmatprep.subr.mxu0 0.0
        %1612 = vmatpush1.msra.mxu0 0.0
        %1613 = vmatprep.subr.mxu0 0.0
        %1614 = vmatpush1.msra.mxu0 0.0
        %1615 = vmatprep.subr.mxu0 0.0
        %1616 = vmatpush1.msra.mxu0 0.0
        %1617 = vmatprep.subr.mxu0 0.0
        %1618 = vmatpush1.msra.mxu0 0.0
        %1619 = vmatprep.subr.mxu0 0.0
        %1620 = vmatpush1.msra.mxu0 0.0
        %1621 = vmatprep.subr.mxu0 0.0
        %1622 = vmatpush1.msra.mxu0 0.0
        %1623 = vmatprep.subr.mxu0 0.0
        %1624 = vmatpush1.msra.mxu0 0.0
        %1625 = vmatprep.subr.mxu0 0.0
        %1626 = vmatpush1.msra.mxu0 0.0
        %1627 = vmatprep.subr.mxu0 0.0
        %1628 = vmatpush1.msra.mxu0 0.0
        %1629 = vmatprep.subr.mxu0 0.0
        %1630 = vmatpush1.msra.mxu0 0.0
        %1631 = vmatprep.subr.mxu0 0.0
        %1632 = vmatpush1.msra.mxu0 0.0
        %1633 = vmatprep.subr.mxu0 0.0
        %1634 = vmatpush1.msra.mxu0 %v1598
        %1635 = vmatprep.subr.mxu0 0.0
        %1636 = vmatpush1.msra.mxu0 %v1597
        %1637 = vmatprep.subr.mxu0 0.0
        %1638 = vmatpush1.msra.mxu0 %v1596
        %1639 = vmatprep.subr.mxu0 0.0
        %1640 = vmatpush1.msra.mxu0 %v1595
        %1641 = vmatprep.subr.mxu0 0.0
        %1642 = vmatpush2.msra.mxu0 0.0
        %1643 = vmatprep.subr.mxu0 0.0
        %1644 = vmatpush2.msra.mxu0 0.0
        %1645 = vmatprep.subr.mxu0 0.0
        %1646 = vmatpush2.msra.mxu0 0.0
        %1647 = vmatprep.subr.mxu0 0.0
        %1648 = vmatpush2.msra.mxu0 0.0
        %1649 = vmatprep.subr.mxu0 0.0
        %1650 = vmatpush2.msra.mxu0 0.0
        %1651 = vmatprep.subr.mxu0 0.0
        %1652 = vmatpush2.msra.mxu0 0.0
        %1653 = vmatprep.subr.mxu0 0.0
        %1654 = vmatpush2.msra.mxu0 0.0
        %1655 = vmatprep.subr.mxu0 0.0
        %1656 = vmatpush2.msra.mxu0 0.0
        %1657 = vmatprep.subr.mxu0 0.0
        %1658 = vmatpush2.msra.mxu0 0.0
        %1659 = vmatprep.subr.mxu0 0.0
        %1660 = vmatpush2.msra.mxu0 0.0
        %1661 = vmatprep.subr.mxu0 0.0
        %1662 = vmatpush2.msra.mxu0 0.0
        %1663 = vmatprep.subr.mxu0 0.0
        %1664 = vmatpush2.msra.mxu0 0.0
        %1665 = vmatprep.subr.mxu0 0.0
        %1666 = vmatpush2.msra.mxu0 0.0
        %1667 = vmatprep.subr.mxu0 0.0
        %1668 = vmatpush2.msra.mxu0 0.0
        %1669 = vmatprep.subr.mxu0 0.0
        %1670 = vmatpush2.msra.mxu0 0.0
        %1671 = vmatprep.subr.mxu0 0.0
        %1672 = vmatpush2.msra.mxu0 0.0
        %1673 = vmatprep.mubr.f32.mxu0 0.0
        %1674 = vmatmul.mubr.f32.gmra.mxu0 %v1607
        %v1675 = vpop.f32.mrf.mxu0
        %v1676 = vadd.f32 %v1604, %v1675
        %v1677 = vpop.f32.mrf.mxu0
        %1678 = vdwg.mxu0
        %v1679 = vmax.f32 %v1676, 0.0
        %v1680 = vld [vmem:[%s9] sm:$0xff]
        %v1681 = vld [vmem:[%s9 + $0x8] sm:$0xff]
        %v1682 = vld [vmem:[%s9 + $0x10] sm:$0xff]
        %v1683 = vld [vmem:[%s9 + $0x18] sm:$0xff]
        %v1684 = vld [vmem:[%s9 + $0x20] sm:$0xff]
        %v1685 = vld [vmem:[%s9 + $0x28] sm:$0xff]
        %v1686 = vld [vmem:[%s9 + $0x30] sm:$0xff]
        %v1687 = vld [vmem:[%s9 + $0x38] sm:$0xff]
        %v1688 = vld [vmem:[%s10] sm:$0x1]
        %v1690 = vlaneseq
        %v1691 = vshrl.u32 %v1690, 7
        %v1692 = vsub.s32 0, %v1691
        %v1693 = vrot.slane %v1688, %v1692
        %vm1695 = vcmask 523264
        %v1697 = vsel %vm1695, %v1679, 0
        %1699 = vmatprep.subr.mxu0 0.0
        %1700 = vmatpush1.msra.mxu0 0.0
        %1701 = vmatprep.subr.mxu0 0.0
        %1702 = vmatpush1.msra.mxu0 0.0
        %1703 = vmatprep.subr.mxu0 0.0
        %1704 = vmatpush1.msra.mxu0 0.0
        %1705 = vmatprep.subr.mxu0 0.0
        %1706 = vmatpush1.msra.mxu0 0.0
        %1707 = vmatprep.subr.mxu0 0.0
        %1708 = vmatpush1.msra.mxu0 0.0
        %1709 = vmatprep.subr.mxu0 0.0
        %1710 = vmatpush1.msra.mxu0 0.0
        %1711 = vmatprep.subr.mxu0 0.0
        %1712 = vmatpush1.msra.mxu0 0.0
        %1713 = vmatprep.subr.mxu0 0.0
        %1714 = vmatpush1.msra.mxu0 0.0
        %1715 = vmatprep.subr.mxu0 0.0
        %1716 = vmatpush1.msra.mxu0 %v1687
        %1717 = vmatprep.subr.mxu0 0.0
        %1718 = vmatpush1.msra.mxu0 %v1686
        %1719 = vmatprep.subr.mxu0 0.0
        %1720 = vmatpush1.msra.mxu0 %v1685
        %1721 = vmatprep.subr.mxu0 0.0
        %1722 = vmatpush1.msra.mxu0 %v1684
        %1723 = vmatprep.subr.mxu0 0.0
        %1724 = vmatpush1.msra.mxu0 %v1683
        %1725 = vmatprep.subr.mxu0 0.0
        %1726 = vmatpush1.msra.mxu0 %v1682
        %1727 = vmatprep.subr.mxu0 0.0
        %1728 = vmatpush1.msra.mxu0 %v1681
        %1729 = vmatprep.subr.mxu0 0.0
        %1730 = vmatpush1.msra.mxu0 %v1680
        %1731 = vmatprep.subr.mxu0 0.0
        %1732 = vmatpush2.msra.mxu0 0.0
        %1733 = vmatprep.subr.mxu0 0.0
        %1734 = vmatpush2.msra.mxu0 0.0
        %1735 = vmatprep.subr.mxu0 0.0
        %1736 = vmatpush2.msra.mxu0 0.0
        %1737 = vmatprep.subr.mxu0 0.0
        %1738 = vmatpush2.msra.mxu0 0.0
        %1739 = vmatprep.subr.mxu0 0.0
        %1740 = vmatpush2.msra.mxu0 0.0
        %1741 = vmatprep.subr.mxu0 0.0
        %1742 = vmatpush2.msra.mxu0 0.0
        %1743 = vmatprep.subr.mxu0 0.0
        %1744 = vmatpush2.msra.mxu0 0.0
        %1745 = vmatprep.subr.mxu0 0.0
        %1746 = vmatpush2.msra.mxu0 0.0
        %1747 = vmatprep.subr.mxu0 0.0
        %1748 = vmatpush2.msra.mxu0 0.0
        %1749 = vmatprep.subr.mxu0 0.0
        %1750 = vmatpush2.msra.mxu0 0.0
        %1751 = vmatprep.subr.mxu0 0.0
        %1752 = vmatpush2.msra.mxu0 0.0
        %1753 = vmatprep.subr.mxu0 0.0
        %1754 = vmatpush2.msra.mxu0 0.0
        %1755 = vmatprep.subr.mxu0 0.0
        %1756 = vmatpush2.msra.mxu0 0.0
        %1757 = vmatprep.subr.mxu0 0.0
        %1758 = vmatpush2.msra.mxu0 0.0
        %1759 = vmatprep.subr.mxu0 0.0
        %1760 = vmatpush2.msra.mxu0 0.0
        %1761 = vmatprep.subr.mxu0 0.0
        %1762 = vmatpush2.msra.mxu0 0.0
        %1763 = vmatprep.mubr.f32.mxu0 0.0
        %1764 = vmatmul.mubr.f32.gmra.mxu0 %v1697
        %v1765 = vpop.f32.mrf.mxu0
        %v1766 = vadd.f32 %v1693, %v1765
        %v1767 = vpop.f32.mrf.mxu0
        %1768 = vdwg.mxu0
        %v1769 = vadd.f32 %v1766, %v1594
        %v1770 = vld [vmem:[%s11] sm:$0x1]
        %v1771 = vld [vmem:[%s12] sm:$0x1]
        %v1772 = vsel %vm705, %v1769, 0.0
        %1773 = vadd.xlane.f32.xlu0 %v1772
        %v1774 = vpop.xlane.xlu0 %1773
        %v1775 = vmul.f32 %v1774, %v1570
        %v1776 = vsub.f32 %v1769, %v1775
        %v1777 = vmul.f32 %v1776, %v1776
        %v1778 = vsel %vm705, %v1777, 0.0
        %1779 = vadd.xlane.f32.xlu0 %v1778
        %v1780 = vpop.xlane.xlu0 %1779
        %v1781 = vmul.f32 %v1780, %v1570
        %v1782 = vadd.f32 %v1781, 1e-06
        %v1783 = vrsqrt.pop %v1782
        %v1784 = vmul.f32 %v1776, %v1783
        %v1786 = vlaneseq
        %v1787 = vshrl.u32 %v1786, 7
        %v1788 = vsub.s32 0, %v1787
        %v1789 = vrot.slane %v1770, %v1788
        %v1791 = vmul.f32 %v1784, %v1789
        %v1793 = vlaneseq
        %v1794 = vshrl.u32 %v1793, 7
        %v1795 = vsub.s32 0, %v1794
        %v1796 = vrot.slane %v1771, %v1795
        %v1798 = vadd.f32 %v1791, %v1796
        %1799 = vst.msk [vmem:[%s531] sm:$0xff] %vm705, %v1798
        %s1800 = sand.u32 %s336, 1
        %s1801 = scalar_lea.sflag [#allocation8], %s1800
        %s1802 = sand.u32 %s336, 1
        %s1803 = smul.addr %s1802, 8
        %s1804 = scalar_lea.vmem [#allocation12], %s1803
        %s1805 = sand.u32 %s364, 1
        %s1806 = scalar_lea.sflag [#allocation14], %s1805
        %s1807 = sand.u32 %s364, 1
        %s1808 = smul.addr %s1807, 32
        %s1809 = scalar_lea.vmem [#allocation13], %s1808
        // Predicated region
        $region89: #{tpu_custom_call.1} parent=71 // pred_check
          %p1810 = pneg %p346
        $region90: #{tpu_custom_call.1} parent=71 // pred_check_branch
          %1812 = sbr.rel (%p1810) target = $region92
        $region91: #{tpu_custom_call.1} parent=71 // pred_region
          %s1814 = ssub.s32 128, 128
          %1815 = vsyncadd %s1801, %s1814
          %s1816 = sadd.s32 %s41, %s40
          %s1817 = smul.addr %s1816, 128
          %s1818 = scalar_lea.hbm %s13, %s1817
          %s1820 = sshll.u32 %s1804, 4
          %s1821 = int_to_ptr.vmem [resolvable:$true] %s1820
          %1823 = dma.vmem_to_hbm [thread:$0]  %s1821, 128, %s1818, %s1801
        $region92: #{tpu_custom_call.1} parent=71 // pred_fallthru
          _
        // Predicated region
        $region93: #{tpu_custom_call.1} parent=71 // pred_check
          %p1824 = pneg %p374
        $region94: #{tpu_custom_call.1} parent=71 // pred_check_branch
          %1826 = sbr.rel (%p1824) target = $region96
        $region95: #{tpu_custom_call.1} parent=71 // pred_region
          %s1828 = ssub.s32 512, 512
          %1829 = vsyncadd %s1806, %s1828
          %s1830 = smul.addr %s40, 4
          %s1831 = sadd.s32 %s41, %s1830
          %s1832 = smul.addr %s1831, 128
          %s1833 = scalar_lea.hbm %s14, %s1832
          %s1834 = sshll.u32 %s1809, 4
          %s1835 = int_to_ptr.vmem [resolvable:$true] %s1834
          %1840 = dma.vmem_to_hbm [thread:$0]  %s1835, 512, %s1833, %s1806, 128, 128, 8
        $region96: #{tpu_custom_call.1} parent=71 // pred_fallthru
          _
      $region72: #{tpu_custom_call.1} parent=5 // pred_fallthru
        _
      %p1841 = scmp.le.s32.totalorder 2, %s31
      // Predicated region
      $region97: #{tpu_custom_call.1} parent=5 // pred_check
        %p1842 = pneg %p1841
      $region98: #{tpu_custom_call.1} parent=5 // pred_check_branch
        %1844 = sbr.rel (%p1842) target = $region100
      $region99: #{tpu_custom_call.1} parent=5 // pred_region
        %s1845 = ssub.s32 %s31, 2
        // Predicated region
        $region101: #{tpu_custom_call.1} parent=99 // pred_check
          %p1846 = pneg %p352
        $region102: #{tpu_custom_call.1} parent=99 // pred_check_branch
          %1848 = sbr.rel (%p1846) target = $region104
        $region103: #{tpu_custom_call.1} parent=99 // pred_region
          %s1849 = sand.u32 %s337, 1
          %s1850 = scalar_lea.sflag [#allocation8], %s1849
          %s1851 = sand.u32 %s337, 1
          %s1852 = smul.addr %s1851, 8
          %s1853 = scalar_lea.vmem [#allocation12], %s1852
          %1854 = dma.done %s1850, 128
        $region104: #{tpu_custom_call.1} parent=99 // pred_fallthru
          _
        // Predicated region
        $region105: #{tpu_custom_call.1} parent=99 // pred_check
          %p1855 = pneg %p380
        $region106: #{tpu_custom_call.1} parent=99 // pred_check_branch
          %1857 = sbr.rel (%p1855) target = $region108
        $region107: #{tpu_custom_call.1} parent=99 // pred_region
          %s1858 = sand.u32 %s365, 1
          %s1859 = scalar_lea.sflag [#allocation14], %s1858
          %s1860 = sand.u32 %s365, 1
          %s1861 = smul.addr %s1860, 32
          %s1862 = scalar_lea.vmem [#allocation13], %s1861
          %1863 = dma.done %s1859, 512
        $region108: #{tpu_custom_call.1} parent=99 // pred_fallthru
          _
      $region100: #{tpu_custom_call.1} parent=5 // pred_fallthru
        _
    $region6: #{tpu_custom_call.1} parent=1 // loop_footer
      %s35 = sadd.s32 1, %s31
    $region7: #{tpu_custom_call.1} parent=1 // loop_footer_branch
      %30 = sbr.rel target = $region3
    $region8: #{tpu_custom_call.1} parent=1 // loop_exit
      _
    %1864 = vsyncpa [#allocation7], 1
    %s1865 = scalar_lea.sflag [#allocation7], 1
    %1866 = vsyncpa %s1865, 1
    %1867 = vsyncpa [#allocation10], 1
    %1868 = vsyncpa [#allocation8], 1
    %s1869 = scalar_lea.sflag [#allocation8], 1
    %1870 = vsyncpa %s1869, 1
    %1871 = vsyncpa [#allocation14], 1
    %s1872 = scalar_lea.sflag [#allocation14], 1
    %1873 = vsyncpa %s1872, 1

</llo_original>
